<compile_context>
chip_gen: v5e
topology: v5e:2x2
jax: 0.10.0
libtpu: 0.0.40
codegen_flags: <defaults>
</compile_context>

<pallas_src>
import functools

import jax
import jax.numpy as jnp
from jax.experimental import pallas as pl
from jax.experimental.pallas import tpu as pltpu

_LANE = 128
_MIB = 1024 * 1024


def _round_up(x: int, m: int) -> int:
    return ((x + m - 1) // m) * m


def _pick_tile(dim: int, max_tile: int = 1024) -> int:
    """Largest MXU/lane-friendly tile <= max_tile; the dim is padded up to it."""
    target = _round_up(max(dim, 1), _LANE)
    for cand in (1024, 512, 256, 128):
        if cand <= max_tile and cand <= target:
            return cand
    return _LANE


def _vmem_budget() -> int:
    """~75% of physical VMEM per generation (128 MiB v5e/v6e, 64 MiB v7x)."""
    cap = None
    try:
        cap = getattr(pltpu.get_tpu_info(), "vmem_capacity_bytes", None)
    except Exception:
        cap = None
    if not cap:
        cap = 64 * _MIB  # conservative fallback (v7x-sized)
    return int(cap) * 3 // 4


# ----------------------------- Pallas kernel -------------------------------
def _propagate_kernel(a_ref, e_ref, o_ref, *, tk: int):
    """One propagation block-matmul: o = A_block @ E, accumulated over k tiles.

    The output block index is constant along the reduction axis k, so o_ref is
    VMEM-resident across the whole reduction and serves as the f32 accumulator.
    """
    k = pl.program_id(1)

    @pl.when(k == 0)
    def _():
        o_ref[...] = jnp.zeros_like(o_ref)

    if e_ref.shape[0] == tk:
        # E delivered as a (tk, F) tile per grid step (tiled fallback, or a
        # resident E whose whole K extent equals one tile).
        e_blk = e_ref[...]
    else:
        # E fully VMEM-resident; slice the k-th (tk, F) block in-kernel.
        start = pl.multiple_of(k * tk, tk)
        e_blk = e_ref[pl.ds(start, tk), :]

    o_ref[...] += jnp.dot(a_ref[...], e_blk, preferred_element_type=jnp.float32)


def graph_propagate(a_bf16: jax.Array, emb: jax.Array, *, tm: int, tk: int
                    ) -> jax.Array:
    """Computes a_bf16 @ emb with a tiled MXU matmul (bf16 in, f32 out).

    Expects a_bf16 (M, K) already padded/cast (M % tm == 0, K % tk == 0) and
    emb (K, F) with F a multiple of 128.
    """
    m, kdim = a_bf16.shape
    k_e, f = emb.shape
    assert kdim == k_e, "adjacency / embedding shape mismatch"
    assert m % tm == 0 and kdim % tk == 0 and f % _LANE == 0

    e = emb.astype(jnp.bfloat16)
    grid_i, grid_k = m // tm, kdim // tk

    budget = _vmem_budget()
    slack = 4 * _MIB
    o_buf = 2 * tm * f * 4                 # f32 output block, double-buffered
    a_buf2 = 2 * tm * tk * 2               # bf16 A tile, double-buffered
    resident_e_bytes = 2 * kdim * f * 2    # conservative (assume 2 buffers)
    tiled_e_bytes = 2 * tk * f * 2

    e_resident = (resident_e_bytes + a_buf2 + o_buf + slack) <= budget
    if e_resident:
        # E is DMA'd once for the whole call and sliced in-kernel.
        e_spec = pl.BlockSpec((kdim, f), lambda i, k: (0, 0))
        e_bytes = resident_e_bytes
    else:
        # Very large K on small-VMEM parts: tile E along k (extra E traffic).
        e_spec = pl.BlockSpec((tk, f), lambda i, k: (k, 0))
        e_bytes = tiled_e_bytes

    # Triple-buffer the A stream when the reduction is long and VMEM allows,
    # to hide residual DMA latency (mainly helps v7x at 3.2 TB/s).
    a_buffers = 3 if (grid_k >= 4 and
                      (3 * tm * tk * 2 + o_buf + e_bytes + slack) <= budget) else 2
    if a_buffers == 3:
        a_spec = pl.BlockSpec((tm, tk), lambda i, k: (i, k),
                              pipeline_mode=pl.Buffered(3))
    else:
        a_spec = pl.BlockSpec((tm, tk), lambda i, k: (i, k))

    need = a_buffers * tm * tk * 2 + o_buf + e_bytes
    vmem_limit = int(min(budget, max(32 * _MIB, need + slack)))

    return pl.pallas_call(
        functools.partial(_propagate_kernel, tk=tk),
        out_shape=jax.ShapeDtypeStruct((m, f), jnp.float32),
        grid_spec=pltpu.PrefetchScalarGridSpec(
            num_scalar_prefetch=0,
            grid=(grid_i, grid_k),
            in_specs=[a_spec, e_spec],
            out_specs=pl.BlockSpec((tm, f), lambda i, k: (i, 0)),
        ),
        compiler_params=pltpu.CompilerParams(
            dimension_semantics=("parallel", "arbitrary"),
            vmem_limit_bytes=vmem_limit,
        ),
    )(a_bf16, e)


# ----------------------------- LightGCN model ------------------------------
class LightGCNPallas:
    """LightGCN forward (eval mode, dropout inactive) with a Pallas hot path."""

    def __init__(self, n_users: int, n_items: int, n_factors: int,
                 n_layers: int, dropout: float = 0.0, seed: int = 0,
                 max_tile: int = 1024):
        self.n_users = n_users
        self.n_items = n_items
        self.n_factors = n_factors
        self.n_layers = n_layers
        self.dropout = dropout  # eval mode -> no dropout applied in forward
        # TODO(synk): training-mode F.dropout on the propagated embeddings is
        # not implemented (eval-path parity with the PyTorch module).

        # Per-dimension tiles; each dimension is zero-padded to its tile so
        # the kernel always runs at full tile width.  For realistic graphs
        # rows/tile >= 2, so the 'parallel' i axis feeds both v7x TensorCores.
        self.tile_u = _pick_tile(n_users, max_tile)
        self.tile_i = _pick_tile(n_items, max_tile)
        self.u_pad = _round_up(n_users, self.tile_u)
        self.i_pad = _round_up(n_items, self.tile_i)
        self.f_pad = _round_up(n_factors, _LANE)

        key = jax.random.PRNGKey(seed)
        ku, ki = jax.random.split(key)
        # nn.init.normal_(weight, std=0.1)
        self.user_embedding = 0.1 * jax.random.normal(
            ku, (n_users, n_factors), dtype=jnp.float32)
        self.item_embedding = 0.1 * jax.random.normal(
            ki, (n_items, n_factors), dtype=jnp.float32)

        self.adj_matrix = None
        self._r_ui = None  # (u_pad, i_pad) bf16: normalized user->item block
        self._r_iu = None  # (i_pad, u_pad) bf16: normalized item->user block

    def set_adj_matrix(self, adj_matrix: jax.Array) -> None:
        """Stores the adjacency pre-split / pre-padded / pre-cast (done once,
        outside the per-forward jitted path)."""
        adj = jnp.asarray(adj_matrix, dtype=jnp.float32)
        u = self.n_users
        n = self.n_users + self.n_items
        assert adj.shape == (n, n), "adjacency must be (n_users+n_items)^2"
        # LightGCN's normalized adjacency is bipartite: the user-user and
        # item-item diagonal blocks are structurally zero.
        uu = float(jnp.max(jnp.abs(adj[:u, :u])))
        ii = float(jnp.max(jnp.abs(adj[u:, u:])))
        assert uu == 0.0 and ii == 0.0, "adjacency is not bipartite"
        # Cast to bf16 BEFORE padding, pad to the tile multiples once.
        # TODO(synk): optional fp8 (v7x) / int8 (v5e,v6e) streaming of R with a
        # global scale would halve A traffic again; needs underflow validation.
        r_ui = adj[:u, u:].astype(jnp.bfloat16)
        r_iu = adj[u:, :u].astype(jnp.bfloat16)
        self._r_ui = jnp.pad(
            r_ui, ((0, self.u_pad - u), (0, self.i_pad - self.n_items)))
        self._r_iu = jnp.pad(
            r_iu, ((0, self.i_pad - self.n_items), (0, self.u_pad - u)))
        self.adj_matrix = adj

    @functools.partial(jax.jit, static_argnums=0)
    def _forward(self, r_ui, r_iu, user_w, item_w):
        f, f_pad = self.n_factors, self.f_pad
        # Zero-pad embeddings once; padded rows stay zero through propagation.
        eu = jnp.pad(user_w, ((0, self.u_pad - self.n_users), (0, f_pad - f)))
        ei = jnp.pad(item_w, ((0, self.i_pad - self.n_items), (0, f_pad - f)))

        acc_u, acc_i = eu, ei
        cur_u, cur_i = eu, ei
        for _ in range(self.n_layers):
            # adj @ E with adj = [[0,R],[R^T,0]]  ==  two half-size matmuls.
            new_u = graph_propagate(r_ui, cur_i, tm=self.tile_u, tk=self.tile_i)
            new_i = graph_propagate(r_iu, cur_u, tm=self.tile_i, tk=self.tile_u)
            cur_u, cur_i = new_u, new_i
            acc_u = acc_u + cur_u
            acc_i = acc_i + cur_i

        inv = 1.0 / jnp.float32(self.n_layers + 1)
        user_out = (acc_u * inv)[: self.n_users, :f]
        item_out = (acc_i * inv)[: self.n_items, :f]
        return user_out, item_out

    def forward(self):
        if self.adj_matrix is None:
            raise ValueError("Adjacency matrix has not been set")
        return self._forward(self._r_ui, self._r_iu,
                             self.user_embedding, self.item_embedding)


# ----------------------------- helpers --------------------------------------
def build_normalized_adj(n_users: int, n_items: int, key) -> jax.Array:
    """Dense symmetric-normalized bipartite adjacency D^-1/2 A D^-1/2."""
    # TODO(synk): realistic LightGCN graphs are sparse; a block-sparse
    # tile-skip path (scalar-prefetched nonzero-tile list) is needed to scale
    # past small/medium graphs — not implemented here.
    r = (jax.random.uniform(key, (n_users, n_items)) < 0.05).astype(jnp.float32)
    n = n_users + n_items
    a = jnp.zeros((n, n), dtype=jnp.float32)
    a = a.at[:n_users, n_users:].set(r)
    a = a.at[n_users:, :n_users].set(r.T)
    deg = jnp.sum(a, axis=1)
    d_inv_sqrt = jnp.where(deg > 0, 1.0 / jnp.sqrt(deg), 0.0)
    return a * d_inv_sqrt[:, None] * d_inv_sqrt[None, :]


if __name__ == "__main__":
    # Small demo: 192 users + 320 items, F = 64 (lane-padded to 128).
    # tile_u = 256, tile_i = 256  ->  R_ui grid (1,2) exercises the
    # k-accumulation path, R_iu grid (2,1) exercises the parallel i axis.
    n_users, n_items, n_factors, n_layers = 192, 320, 64, 3

    key = jax.random.PRNGKey(0)
    model = LightGCNPallas(n_users, n_items, n_factors, n_layers,
                           dropout=0.0, seed=0)
    adj = build_normalized_adj(n_users, n_items, key)
    model.set_adj_matrix(adj)

    user_out, item_out = model.forward()
    user_out = jax.block_until_ready(user_out)
    item_out = jax.block_until_ready(item_out)

    # Pure-JAX reference mirroring the bf16-input / f32-accumulate math on the
    # full (unsplit) adjacency.
    adj_bf = adj.astype(jnp.bfloat16).astype(jnp.float32)
    all_emb = jnp.concatenate([model.user_embedding, model.item_embedding], 0)
    embs = [all_emb]
    cur = all_emb
    for _ in range(n_layers):
        cur = adj_bf @ cur.astype(jnp.bfloat16).astype(jnp.float32)
        embs.append(cur)
    ref = jnp.mean(jnp.stack(embs, axis=1), axis=1)
    ref_user, ref_item = ref[:n_users], ref[n_users:]

    assert user_out.shape == (n_users, n_factors)
    assert item_out.shape == (n_items, n_factors)
    assert jnp.allclose(user_out, ref_user, atol=1e-3, rtol=1e-2), (
        float(jnp.max(jnp.abs(user_out - ref_user))))
    assert jnp.allclose(item_out, ref_item, atol=1e-3, rtol=1e-2), (
        float(jnp.max(jnp.abs(item_out - ref_item))))

    print("KERNEL_OK")
</pallas_src>

<mosaic_0001>
module attributes {stable_mosaic.version = 11 : i64} {
  func.func @_propagate_kernel(%arg0: i32, %arg1: i32, %arg2: memref<256x256xbf16, #tpu.memory_space<vmem>>, %arg3: memref<512x128xbf16, #tpu.memory_space<vmem>>, %arg4: memref<256x128xf32, #tpu.memory_space<vmem>>) attributes {dimension_semantics = [#tpu.dimension_semantics<parallel>, #tpu.dimension_semantics<arbitrary>], iteration_bounds = array<i64: 1, 2>, scalar_prefetch = 0 : i64, scratch_operands = 0 : i64, tpu.core_type = #tpu.core_type<tc>, window_params = [{transform_indices = @transform_0, window_bounds = array<i64: 256, 256>}, {pipeline_mode = #tpu.pipeline_mode<synchronous>, transform_indices = @transform_1, window_bounds = array<i64: 512, 128>}, {transform_indices = @transform_2, window_bounds = array<i64: 256, 128>}]} {
    %c0_i32 = arith.constant 0 : i32
    %0 = arith.cmpi eq, %arg1, %c0_i32 : i32
    %1 = arith.extui %0 : i1 to i32
    %c0_i32_0 = arith.constant 0 : i32
    %2 = arith.cmpi ne, %1, %c0_i32_0 : i32
    scf.if %2 {
      %cst_7 = arith.constant 0.000000e+00 : f32
      %12 = vector.broadcast %cst_7 : f32 to vector<256x128xf32>
      %c0_8 = arith.constant 0 : index
      %c0_9 = arith.constant 0 : index
      %13 = vector.load %arg4[%c0_8, %c0_9] : memref<256x128xf32, #tpu.memory_space<vmem>>, vector<256x128xf32>
      tpu.vector_store %arg4[%c0_8, %c0_9], %12 {strides = array<i32>} : memref<256x128xf32, #tpu.memory_space<vmem>>, vector<256x128xf32>,
    } else {
    }
    %c256_i32 = arith.constant 256 : i32
    %3 = arith.muli %arg1, %c256_i32 : i32
    %4 = tpu.assume_multiple %3, 256 : i32
    %5 = arith.index_cast %4 : i32 to index
    %c0 = arith.constant 0 : index
    %6 = vector.load %arg3[%5, %c0] : memref<512x128xbf16, #tpu.memory_space<vmem>>, vector<256x128xbf16>
    %c0_1 = arith.constant 0 : index
    %c0_2 = arith.constant 0 : index
    %7 = vector.load %arg4[%c0_1, %c0_2] : memref<256x128xf32, #tpu.memory_space<vmem>>, vector<256x128xf32>
    %c0_3 = arith.constant 0 : index
    %c0_4 = arith.constant 0 : index
    %8 = vector.load %arg2[%c0_3, %c0_4] : memref<256x256xbf16, #tpu.memory_space<vmem>>, vector<256x256xbf16>
    %cst = arith.constant dense<0.000000e+00> : vector<256x128xf32>
    %9 = tpu.matmul %8, %6, %cst {dimension_numbers = #tpu.dot_dimension_numbers<[1], [0], [0], [1], [0, 0, 1, 1], [], []>} : vector<256x256xbf16>, vector<256x128xbf16>, vector<256x128xf32> -> vector<256x128xf32>
    %10 = arith.addf %7, %9 : vector<256x128xf32>
    %c0_5 = arith.constant 0 : index
    %c0_6 = arith.constant 0 : index
    %11 = vector.load %arg4[%c0_5, %c0_6] : memref<256x128xf32, #tpu.memory_space<vmem>>, vector<256x128xf32>
    tpu.vector_store %arg4[%c0_5, %c0_6], %10 {strides = array<i32>} : memref<256x128xf32, #tpu.memory_space<vmem>>, vector<256x128xf32>,
    return
  }
  func.func @transform_0(%arg0: i32, %arg1: i32) -> (i32, i32) {
    %c0_i32 = arith.constant 0 : i32
    return %arg0, %arg1 : i32, i32
  }
  func.func @transform_1(%arg0: i32, %arg1: i32) -> (i32, i32) {
    %c0_i32 = arith.constant 0 : i32
    %c0_i32_0 = arith.constant 0 : i32
    %c0_i32_1 = arith.constant 0 : i32
    return %c0_i32, %c0_i32_0 : i32, i32
  }
  func.func @transform_2(%arg0: i32, %arg1: i32) -> (i32, i32) {
    %c0_i32 = arith.constant 0 : i32
    %c0_i32_0 = arith.constant 0 : i32
    return %arg0, %c0_i32 : i32, i32
  }
}

module attributes {stable_mosaic.version = 11 : i64} {
  func.func @_propagate_kernel(%arg0: i32, %arg1: i32, %arg2: memref<256x256xbf16, #tpu.memory_space<vmem>>, %arg3: memref<256x128xbf16, #tpu.memory_space<vmem>>, %arg4: memref<256x128xf32, #tpu.memory_space<vmem>>) attributes {dimension_semantics = [#tpu.dimension_semantics<parallel>, #tpu.dimension_semantics<arbitrary>], iteration_bounds = array<i64: 2, 1>, scalar_prefetch = 0 : i64, scratch_operands = 0 : i64, tpu.core_type = #tpu.core_type<tc>, window_params = [{transform_indices = @transform_0, window_bounds = array<i64: 256, 256>}, {pipeline_mode = #tpu.pipeline_mode<synchronous>, transform_indices = @transform_1, window_bounds = array<i64: 256, 128>}, {transform_indices = @transform_2, window_bounds = array<i64: 256, 128>}]} {
    %c0_i32 = arith.constant 0 : i32
    %0 = arith.cmpi eq, %arg1, %c0_i32 : i32
    %1 = arith.extui %0 : i1 to i32
    %c0_i32_0 = arith.constant 0 : i32
    %2 = arith.cmpi ne, %1, %c0_i32_0 : i32
    scf.if %2 {
      %cst_8 = arith.constant 0.000000e+00 : f32
      %9 = vector.broadcast %cst_8 : f32 to vector<256x128xf32>
      %c0_9 = arith.constant 0 : index
      %c0_10 = arith.constant 0 : index
      %10 = vector.load %arg4[%c0_9, %c0_10] : memref<256x128xf32, #tpu.memory_space<vmem>>, vector<256x128xf32>
      tpu.vector_store %arg4[%c0_9, %c0_10], %9 {strides = array<i32>} : memref<256x128xf32, #tpu.memory_space<vmem>>, vector<256x128xf32>,
    } else {
    }
    %c0 = arith.constant 0 : index
    %c0_1 = arith.constant 0 : index
    %3 = vector.load %arg3[%c0, %c0_1] : memref<256x128xbf16, #tpu.memory_space<vmem>>, vector<256x128xbf16>
    %c0_2 = arith.constant 0 : index
    %c0_3 = arith.constant 0 : index
    %4 = vector.load %arg4[%c0_2, %c0_3] : memref<256x128xf32, #tpu.memory_space<vmem>>, vector<256x128xf32>
    %c0_4 = arith.constant 0 : index
    %c0_5 = arith.constant 0 : index
    %5 = vector.load %arg2[%c0_4, %c0_5] : memref<256x256xbf16, #tpu.memory_space<vmem>>, vector<256x256xbf16>
    %cst = arith.constant dense<0.000000e+00> : vector<256x128xf32>
    %6 = tpu.matmul %5, %3, %cst {dimension_numbers = #tpu.dot_dimension_numbers<[1], [0], [0], [1], [0, 0, 1, 1], [], []>} : vector<256x256xbf16>, vector<256x128xbf16>, vector<256x128xf32> -> vector<256x128xf32>
    %7 = arith.addf %4, %6 : vector<256x128xf32>
    %c0_6 = arith.constant 0 : index
    %c0_7 = arith.constant 0 : index
    %8 = vector.load %arg4[%c0_6, %c0_7] : memref<256x128xf32, #tpu.memory_space<vmem>>, vector<256x128xf32>
    tpu.vector_store %arg4[%c0_6, %c0_7], %7 {strides = array<i32>} : memref<256x128xf32, #tpu.memory_space<vmem>>, vector<256x128xf32>,
    return
  }
  func.func @transform_0(%arg0: i32, %arg1: i32) -> (i32, i32) {
    %c0_i32 = arith.constant 0 : i32
    return %arg0, %arg1 : i32, i32
  }
  func.func @transform_1(%arg0: i32, %arg1: i32) -> (i32, i32) {
    %c0_i32 = arith.constant 0 : i32
    %c0_i32_0 = arith.constant 0 : i32
    %c0_i32_1 = arith.constant 0 : i32
    return %c0_i32, %c0_i32_0 : i32, i32
  }
  func.func @transform_2(%arg0: i32, %arg1: i32) -> (i32, i32) {
    %c0_i32 = arith.constant 0 : i32
    %c0_i32_0 = arith.constant 0 : i32
    return %arg0, %c0_i32 : i32, i32
  }
}

</mosaic_0001>

<llo_original>
// kernel: _forward.6
$region0: #{_forward.6}
  #allocation0 [shape = 'u32[]', space=smem, size = 0x4, offset = 0x4, fixed_abs, tag = 'smem constant byte address 0x4 - core index']
  #allocation1 [shape = 'u32[72,128]{1,0:T(1,128)}', space=vmem, size = 0x9000, scoped, tag = 'internal scratch']
  %s0 = inlined_call_operand.vmem [shape: bf16[256,512], index: 0, kind: input, shape index: {}]
  %s1 = inlined_call_operand.vmem [shape: bf16[512,128], index: 1, kind: input, shape index: {}]
  %s2 = inlined_call_operand.vmem [shape: f32[256,128], index: 2, kind: output, shape index: {}]
  %s3 = sld [smem:[#allocation0]]
  $region83: #{_forward.6} parent=0
    _
  %s5 = ssub.s32 1, %s3
  %s6 = scalar_select 0, %s5, %s3
  $region1: #{_forward.6} parent=0
    #allocation2 [shape = 'u8[262144]{0}', space=vmem, size = 0x40000, scoped, tag = 'input window, operand 0']
    loop: start=0, step=1, limit=4
    $region2: #{_forward.6} parent=1 // loop_pre_header
      _
    $region3: #{_forward.6} parent=1 // loop_header
      %s8 = sphi 0, %s12
      %p9 = scmp.ge.s32.totalorder %s8, 4
      %s15 = sphi 0, %s27
      %s16 = sphi 0, %s23
      %s17 = sphi 0, %s15
      %s18 = sphi 0, %s16
      %s19 = sphi 0, %s17
      %s20 = sphi 0, %s18
      %s32 = sphi 0, %s34
      %s35 = sphi 0, %s32
      %s36 = sphi 0, %s35
      %s52 = sphi 0, %s36
      %s56 = sphi 0, %s56
      %s58 = sphi 0, %s56
      %s59 = sphi 0, %s58
      %s73 = sphi 0, %s59
      %s79 = sphi 0, %s81
      %s82 = sphi 0, %s79
      %s83 = sphi 0, %s82
      %s99 = sphi 0, %s83
    $region4: #{_forward.6} parent=1 // loop_header_branch
      %11 = sbr.rel (%p9) target = $region8
    $region5: #{_forward.6} parent=1 // loop_body
      %s13 = ssub.s32 %s8, 1
      %s14 = ssub.s32 %s8, 2
      %s21 = sadd.s32 1, %s16
      %p22 = scmp.ge.s32.totalorder %s21, 2
      %s23 = scalar_select %p22, 0, %s21
      %s24 = sadd.s32 1, %s15
      %s25 = scalar_select %p22, %s24, %s15
      %p26 = scmp.ge.s32.totalorder %s25, 1
      %s27 = scalar_select %p26, 0, %s25
      %s28 = ssub.s32 %s15, %s27
      %s29 = ssub.s32 %s16, %s23
      %s30 = sor.u32 %s28, %s29
      %p31 = scmp.eq.s32.totalorder %s30, 0
      %s33 = sadd.s32 %s32, 1
      %s34 = scalar_select %p31, %s32, %s33
      %p37 = pneg %p31
      %p38 = scmp.eq.s32.totalorder %s8, 1
      %p39 = por %p37, %p38
      %p40 = scmp.ne.s32.totalorder %s32, %s35
      %p41 = scmp.eq.s32.totalorder %s8, 0
      %p42 = por %p40, %p41
      %p43 = scmp.ne.s32.totalorder %s32, %s35
      %p44 = scmp.eq.s32.totalorder %s13, 1
      %p45 = por %p43, %p44
      %p46 = scmp.ne.s32.totalorder %s35, %s36
      %p47 = scmp.eq.s32.totalorder %s13, 0
      %p48 = por %p46, %p47
      %p49 = scmp.ne.s32.totalorder %s35, %s36
      %p50 = scmp.eq.s32.totalorder %s14, 1
      %p51 = por %p49, %p50
      %p53 = scmp.ne.s32.totalorder %s36, %s52
      %p54 = scmp.eq.s32.totalorder %s14, 0
      %p55 = por %p53, %p54
      %s57 = sadd.s32 %s56, 1
      %p60 = scmp.eq.s32.totalorder %s8, 1
      %p61 = scmp.ne.s32.totalorder %s56, %s58
      %p62 = scmp.eq.s32.totalorder %s8, 0
      %p63 = por %p61, %p62
      %p64 = scmp.ne.s32.totalorder %s56, %s58
      %p65 = scmp.eq.s32.totalorder %s13, 1
      %p66 = por %p64, %p65
      %p67 = scmp.ne.s32.totalorder %s58, %s59
      %p68 = scmp.eq.s32.totalorder %s13, 0
      %p69 = por %p67, %p68
      %p70 = scmp.ne.s32.totalorder %s58, %s59
      %p71 = scmp.eq.s32.totalorder %s14, 1
      %p72 = por %p70, %p71
      %p74 = scmp.ne.s32.totalorder %s59, %s73
      %p75 = scmp.eq.s32.totalorder %s14, 0
      %p76 = por %p74, %p75
      %s77 = ssub.s32 %s15, %s27
      %p78 = scmp.eq.s32.totalorder %s77, 0
      %s80 = sadd.s32 %s79, 1
      %s81 = scalar_select %p78, %s79, %s80
      %p84 = pneg %p78
      %p85 = scmp.eq.s32.totalorder %s8, 1
      %p86 = por %p84, %p85
      %p87 = scmp.ne.s32.totalorder %s79, %s82
      %p88 = scmp.eq.s32.totalorder %s8, 0
      %p89 = por %p87, %p88
      %p90 = scmp.ne.s32.totalorder %s79, %s82
      %p91 = scmp.eq.s32.totalorder %s13, 1
      %p92 = por %p90, %p91
      %p93 = scmp.ne.s32.totalorder %s82, %s83
      %p94 = scmp.eq.s32.totalorder %s13, 0
      %p95 = por %p93, %p94
      %p96 = scmp.ne.s32.totalorder %s82, %s83
      %p97 = scmp.eq.s32.totalorder %s14, 1
      %p98 = por %p96, %p97
      %p100 = scmp.ne.s32.totalorder %s83, %s99
      %p101 = scmp.eq.s32.totalorder %s14, 0
      %p102 = por %p100, %p101
      %p103 = scmp.le.s32.totalorder 1, %s8
      %p104 = scmp.lt.s32.totalorder %s8, 3
      %p105 = pnand %p103, %p104
      %p106 = pneg %p105
      // Predicated region
      $region9: #{_forward.6} parent=5 // pred_check
        _
      $region10: #{_forward.6} parent=5 // pred_check_branch
        %108 = sbr.rel (%p105) target = $region12
      $region11: #{_forward.6} parent=5 // pred_region
        %s109 = ssub.s32 %s8, 1
        // Predicated region
        $region13: #{_forward.6} parent=11 // pred_check
          %p110 = pneg %p69
        $region14: #{_forward.6} parent=11 // pred_check_branch
          %112 = sbr.rel (%p110) target = $region16
        $region15: #{_forward.6} parent=11 // pred_region
          _
        $region16: #{_forward.6} parent=11 // pred_fallthru
          _
      $region12: #{_forward.6} parent=5 // pred_fallthru
        _
      %p113 = scmp.lt.s32.totalorder %s8, 2
      // Predicated region
      $region17: #{_forward.6} parent=5 // pred_check
        %p114 = pneg %p113
      $region18: #{_forward.6} parent=5 // pred_check_branch
        %116 = sbr.rel (%p114) target = $region20
      $region19: #{_forward.6} parent=5 // pred_region
        // Predicated region
        $region21: #{_forward.6} parent=19 // pred_check
          %p117 = pneg %p42
        $region22: #{_forward.6} parent=19 // pred_check_branch
          %119 = sbr.rel (%p117) target = $region24
        $region23: #{_forward.6} parent=19 // pred_region
          %s120 = sand.u32 %s32, 1
          %s121 = sand.u32 %s32, 1
          %s122 = smul.addr %s121, 256
          %s123 = scalar_lea.vmem [#allocation2], %s122
          %s124 = smul.u32 32, %s15
          %s125 = smul.u32 2, %s16
          %s126 = smul.addr %s124, 4
          %s127 = sadd.s32 %s125, %s126
          %s128 = smul.addr %s127, 4
          %s129 = scalar_lea.vmem %s0, %s128
          // Predicated region
          $region25: #{_forward.6} parent=23 // pred_check
            _
          $region26: #{_forward.6} parent=23 // pred_check_branch
            %131 = sbr.rel (0) target = $region28
          $region27: #{_forward.6} parent=23 // pred_region
            // Predicated region
            $region29: #{_forward.6} parent=27 // pred_check
              _
            $region30: #{_forward.6} parent=27 // pred_check_branch
              %133 = sbr.rel (0) target = $region32
            $region31: #{_forward.6} parent=27 // pred_region
              // Predicated region
              $region44: #{_forward.6} parent=31 // pred_check
                _
              $region45: #{_forward.6} parent=31 // pred_check_branch
                %211 = sbr.rel (0) target = $region47
              $region46: #{_forward.6} parent=31 // pred_region
                loop: start=0, step=1, limit=1
                $region48: #{_forward.6} parent=46 // loop_pre_header
                  _
                $region49: #{_forward.6} parent=46 // loop_header
                  %s213 = sphi 0, %s217
                  %p214 = scmp.ge.s32.totalorder %s213, 1
                  %s218 = sphi %s129, %s129
                  %s219 = sphi %s123, %s123
                $region50: #{_forward.6} parent=46 // loop_header_branch
                  %216 = sbr.rel (%p214) target = $region54
                $region51: #{_forward.6} parent=46 // loop_body
                  %v220 = vld [vmem:[%s218] sm:$0xff]
                  %221 = vst [vmem:[%s219] sm:$0xff] %v220
                  %v222 = vld [vmem:[%s218 + $0x10] sm:$0xff]
                  %223 = vst [vmem:[%s219 + $0x8] sm:$0xff] %v222
                  %v224 = vld [vmem:[%s218 + $0x20] sm:$0xff]
                  %225 = vst [vmem:[%s219 + $0x10] sm:$0xff] %v224
                  %v226 = vld [vmem:[%s218 + $0x30] sm:$0xff]
                  %227 = vst [vmem:[%s219 + $0x18] sm:$0xff] %v226
                  %v228 = vld [vmem:[%s218 + $0x40] sm:$0xff]
                  %229 = vst [vmem:[%s219 + $0x20] sm:$0xff] %v228
                  %v230 = vld [vmem:[%s218 + $0x50] sm:$0xff]
                  %231 = vst [vmem:[%s219 + $0x28] sm:$0xff] %v230
                  %v232 = vld [vmem:[%s218 + $0x60] sm:$0xff]
                  %233 = vst [vmem:[%s219 + $0x30] sm:$0xff] %v232
                  %v234 = vld [vmem:[%s218 + $0x70] sm:$0xff]
                  %235 = vst [vmem:[%s219 + $0x38] sm:$0xff] %v234
                  %v236 = vld [vmem:[%s218 + $0x80] sm:$0xff]
                  %237 = vst [vmem:[%s219 + $0x40] sm:$0xff] %v236
                  %v238 = vld [vmem:[%s218 + $0x90] sm:$0xff]
                  %239 = vst [vmem:[%s219 + $0x48] sm:$0xff] %v238
                  %v240 = vld [vmem:[%s218 + $0xa0] sm:$0xff]
                  %241 = vst [vmem:[%s219 + $0x50] sm:$0xff] %v240
                  %v242 = vld [vmem:[%s218 + $0xb0] sm:$0xff]
                  %243 = vst [vmem:[%s219 + $0x58] sm:$0xff] %v242
                  %v244 = vld [vmem:[%s218 + $0xc0] sm:$0xff]
                  %245 = vst [vmem:[%s219 + $0x60] sm:$0xff] %v244
                  %v246 = vld [vmem:[%s218 + $0xd0] sm:$0xff]
                  %247 = vst [vmem:[%s219 + $0x68] sm:$0xff] %v246
                  %v248 = vld [vmem:[%s218 + $0xe0] sm:$0xff]
                  %249 = vst [vmem:[%s219 + $0x70] sm:$0xff] %v248
                  %v250 = vld [vmem:[%s218 + $0xf0] sm:$0xff]
                  %251 = vst [vmem:[%s219 + $0x78] sm:$0xff] %v250
                  %v252 = vld [vmem:[%s218 + $0x100] sm:$0xff]
                  %253 = vst [vmem:[%s219 + $0x80] sm:$0xff] %v252
                  %v254 = vld [vmem:[%s218 + $0x110] sm:$0xff]
                  %255 = vst [vmem:[%s219 + $0x88] sm:$0xff] %v254
                  %v256 = vld [vmem:[%s218 + $0x120] sm:$0xff]
                  %257 = vst [vmem:[%s219 + $0x90] sm:$0xff] %v256
                  %v258 = vld [vmem:[%s218 + $0x130] sm:$0xff]
                  %259 = vst [vmem:[%s219 + $0x98] sm:$0xff] %v258
                  %v260 = vld [vmem:[%s218 + $0x140] sm:$0xff]
                  %261 = vst [vmem:[%s219 + $0xa0] sm:$0xff] %v260
                  %v262 = vld [vmem:[%s218 + $0x150] sm:$0xff]
                  %263 = vst [vmem:[%s219 + $0xa8] sm:$0xff] %v262
                  %v264 = vld [vmem:[%s218 + $0x160] sm:$0xff]
                  %265 = vst [vmem:[%s219 + $0xb0] sm:$0xff] %v264
                  %v266 = vld [vmem:[%s218 + $0x170] sm:$0xff]
                  %267 = vst [vmem:[%s219 + $0xb8] sm:$0xff] %v266
                  %v268 = vld [vmem:[%s218 + $0x180] sm:$0xff]
                  %269 = vst [vmem:[%s219 + $0xc0] sm:$0xff] %v268
                  %v270 = vld [vmem:[%s218 + $0x190] sm:$0xff]
                  %271 = vst [vmem:[%s219 + $0xc8] sm:$0xff] %v270
                  %v272 = vld [vmem:[%s218 + $0x1a0] sm:$0xff]
                  %273 = vst [vmem:[%s219 + $0xd0] sm:$0xff] %v272
                  %v274 = vld [vmem:[%s218 + $0x1b0] sm:$0xff]
                  %275 = vst [vmem:[%s219 + $0xd8] sm:$0xff] %v274
                  %v276 = vld [vmem:[%s218 + $0x1c0] sm:$0xff]
                  %277 = vst [vmem:[%s219 + $0xe0] sm:$0xff] %v276
                  %v278 = vld [vmem:[%s218 + $0x1d0] sm:$0xff]
                  %279 = vst [vmem:[%s219 + $0xe8] sm:$0xff] %v278
                  %v280 = vld [vmem:[%s218 + $0x1e0] sm:$0xff]
                  %281 = vst [vmem:[%s219 + $0xf0] sm:$0xff] %v280
                  %v282 = vld [vmem:[%s218 + $0x1f0] sm:$0xff]
                  %283 = vst [vmem:[%s219 + $0xf8] sm:$0xff] %v282
                $region52: #{_forward.6} parent=46 // loop_footer
                  %s217 = sadd.s32 1, %s213
                $region53: #{_forward.6} parent=46 // loop_footer_branch
                  %212 = sbr.rel target = $region49
                $region54: #{_forward.6} parent=46 // loop_exit
                  _
              $region47: #{_forward.6} parent=31 // pred_fallthru
                _
              // Predicated region
              $region55: #{_forward.6} parent=31 // pred_check
                _
              $region56: #{_forward.6} parent=31 // pred_check_branch
                %285 = sbr.rel target = $region58
              $region57: #{_forward.6} parent=31 // pred_region
                _
              $region58: #{_forward.6} parent=31 // pred_fallthru
                _
            $region32: #{_forward.6} parent=27 // pred_fallthru
              _
            // Predicated region
            $region33: #{_forward.6} parent=27 // pred_check
              _
            $region34: #{_forward.6} parent=27 // pred_check_branch
              %135 = sbr.rel target = $region36
            $region35: #{_forward.6} parent=27 // pred_region
              %s137 = ssub.s32 256, 1
              loop: start=0, step=1, limit=1
              $region37: #{_forward.6} parent=35 // loop_pre_header
                _
              $region38: #{_forward.6} parent=35 // loop_header
                %s139 = sphi 0, %s143
                %p140 = scmp.ge.s32.totalorder %s139, 1
                %s144 = sphi %s129, %s129
                %s145 = sphi %s123, %s123
              $region39: #{_forward.6} parent=35 // loop_header_branch
                %142 = sbr.rel (%p140) target = $region43
              $region40: #{_forward.6} parent=35 // loop_body
                %v146 = vld [vmem:[%s144] sm:%s137]
                %147 = vst [vmem:[%s145] sm:%s137] %v146
                %v148 = vld [vmem:[%s144 + $0x10] sm:%s137]
                %149 = vst [vmem:[%s145 + $0x8] sm:%s137] %v148
                %v150 = vld [vmem:[%s144 + $0x20] sm:%s137]
                %151 = vst [vmem:[%s145 + $0x10] sm:%s137] %v150
                %v152 = vld [vmem:[%s144 + $0x30] sm:%s137]
                %153 = vst [vmem:[%s145 + $0x18] sm:%s137] %v152
                %v154 = vld [vmem:[%s144 + $0x40] sm:%s137]
                %155 = vst [vmem:[%s145 + $0x20] sm:%s137] %v154
                %v156 = vld [vmem:[%s144 + $0x50] sm:%s137]
                %157 = vst [vmem:[%s145 + $0x28] sm:%s137] %v156
                %v158 = vld [vmem:[%s144 + $0x60] sm:%s137]
                %159 = vst [vmem:[%s145 + $0x30] sm:%s137] %v158
                %v160 = vld [vmem:[%s144 + $0x70] sm:%s137]
                %161 = vst [vmem:[%s145 + $0x38] sm:%s137] %v160
                %v162 = vld [vmem:[%s144 + $0x80] sm:%s137]
                %163 = vst [vmem:[%s145 + $0x40] sm:%s137] %v162
                %v164 = vld [vmem:[%s144 + $0x90] sm:%s137]
                %165 = vst [vmem:[%s145 + $0x48] sm:%s137] %v164
                %v166 = vld [vmem:[%s144 + $0xa0] sm:%s137]
                %167 = vst [vmem:[%s145 + $0x50] sm:%s137] %v166
                %v168 = vld [vmem:[%s144 + $0xb0] sm:%s137]
                %169 = vst [vmem:[%s145 + $0x58] sm:%s137] %v168
                %v170 = vld [vmem:[%s144 + $0xc0] sm:%s137]
                %171 = vst [vmem:[%s145 + $0x60] sm:%s137] %v170
                %v172 = vld [vmem:[%s144 + $0xd0] sm:%s137]
                %173 = vst [vmem:[%s145 + $0x68] sm:%s137] %v172
                %v174 = vld [vmem:[%s144 + $0xe0] sm:%s137]
                %175 = vst [vmem:[%s145 + $0x70] sm:%s137] %v174
                %v176 = vld [vmem:[%s144 + $0xf0] sm:%s137]
                %177 = vst [vmem:[%s145 + $0x78] sm:%s137] %v176
                %v178 = vld [vmem:[%s144 + $0x100] sm:%s137]
                %179 = vst [vmem:[%s145 + $0x80] sm:%s137] %v178
                %v180 = vld [vmem:[%s144 + $0x110] sm:%s137]
                %181 = vst [vmem:[%s145 + $0x88] sm:%s137] %v180
                %v182 = vld [vmem:[%s144 + $0x120] sm:%s137]
                %183 = vst [vmem:[%s145 + $0x90] sm:%s137] %v182
                %v184 = vld [vmem:[%s144 + $0x130] sm:%s137]
                %185 = vst [vmem:[%s145 + $0x98] sm:%s137] %v184
                %v186 = vld [vmem:[%s144 + $0x140] sm:%s137]
                %187 = vst [vmem:[%s145 + $0xa0] sm:%s137] %v186
                %v188 = vld [vmem:[%s144 + $0x150] sm:%s137]
                %189 = vst [vmem:[%s145 + $0xa8] sm:%s137] %v188
                %v190 = vld [vmem:[%s144 + $0x160] sm:%s137]
                %191 = vst [vmem:[%s145 + $0xb0] sm:%s137] %v190
                %v192 = vld [vmem:[%s144 + $0x170] sm:%s137]
                %193 = vst [vmem:[%s145 + $0xb8] sm:%s137] %v192
                %v194 = vld [vmem:[%s144 + $0x180] sm:%s137]
                %195 = vst [vmem:[%s145 + $0xc0] sm:%s137] %v194
                %v196 = vld [vmem:[%s144 + $0x190] sm:%s137]
                %197 = vst [vmem:[%s145 + $0xc8] sm:%s137] %v196
                %v198 = vld [vmem:[%s144 + $0x1a0] sm:%s137]
                %199 = vst [vmem:[%s145 + $0xd0] sm:%s137] %v198
                %v200 = vld [vmem:[%s144 + $0x1b0] sm:%s137]
                %201 = vst [vmem:[%s145 + $0xd8] sm:%s137] %v200
                %v202 = vld [vmem:[%s144 + $0x1c0] sm:%s137]
                %203 = vst [vmem:[%s145 + $0xe0] sm:%s137] %v202
                %v204 = vld [vmem:[%s144 + $0x1d0] sm:%s137]
                %205 = vst [vmem:[%s145 + $0xe8] sm:%s137] %v204
                %v206 = vld [vmem:[%s144 + $0x1e0] sm:%s137]
                %207 = vst [vmem:[%s145 + $0xf0] sm:%s137] %v206
                %v208 = vld [vmem:[%s144 + $0x1f0] sm:%s137]
                %209 = vst [vmem:[%s145 + $0xf8] sm:%s137] %v208
              $region41: #{_forward.6} parent=35 // loop_footer
                %s143 = sadd.s32 1, %s139
              $region42: #{_forward.6} parent=35 // loop_footer_branch
                %138 = sbr.rel target = $region38
              $region43: #{_forward.6} parent=35 // loop_exit
                _
            $region36: #{_forward.6} parent=27 // pred_fallthru
              _
          $region28: #{_forward.6} parent=23 // pred_fallthru
            _
          %286 = vnop
        $region24: #{_forward.6} parent=19 // pred_fallthru
          _
      $region20: #{_forward.6} parent=5 // pred_fallthru
        _
      %p287 = scmp.le.s32.totalorder 1, %s8
      %p288 = scmp.lt.s32.totalorder %s8, 3
      %p289 = pnand %p287, %p288
      %p290 = pneg %p289
      // Predicated region
      $region59: #{_forward.6} parent=5 // pred_check
        _
      $region60: #{_forward.6} parent=5 // pred_check_branch
        %292 = sbr.rel (%p289) target = $region62
      $region61: #{_forward.6} parent=5 // pred_region
        %s293 = ssub.s32 %s8, 1
        %s294 = sand.u32 %s35, 1
        %s295 = sand.u32 %s35, 1
        %s296 = smul.addr %s295, 256
        %s297 = scalar_lea.vmem [#allocation2], %s296
        // Predicated region
        $region63: #{_forward.6} parent=61 // pred_check
          %p298 = pneg %p48
        $region64: #{_forward.6} parent=61 // pred_check_branch
          %300 = sbr.rel (%p298) target = $region66
        $region65: #{_forward.6} parent=61 // pred_region
          _
        $region66: #{_forward.6} parent=61 // pred_fallthru
          _
        %s301 = sand.u32 %s35, 1
        %s302 = sand.u32 %s35, 1
        %s303 = smul.addr %s302, 256
        %s304 = scalar_lea.vmem [#allocation2], %s303
        %p305 = pneg %p48
        %p306 = pneg %p45
        %p307 = pneg %p69
        %p308 = pneg %p66
        %p309 = pneg %p95
        %p310 = pneg %p92
        %s311 = smul.u32 32, %s17
        %p312 = scmp.lt.s32.totalorder %s311, 31
        %s313 = scalar_select %p312, %s311, 31
        %s314 = smul.addr %s313, 8
        %s315 = scalar_lea.vmem %s2, %s314
        %s316 = smul.u32 32, %s17
        %s317 = smul.u32 2, %s18
        %s318 = smul.u32 32, %s17
        %p319 = scmp.lt.s32.totalorder %s318, 31
        %s320 = scalar_select %p319, %s318, 31
        %s321 = smul.addr %s320, 8
        %s322 = scalar_lea.vmem %s2, %s321
        %s323 = smul.u32 32, %s17
        %p324 = scmp.eq.s32.totalorder %s18, 0
        // Predicated region
        $region67: #{_forward.6} parent=61 // pred_check
          %p325 = pneg %p324
        $region68: #{_forward.6} parent=61 // pred_check_branch
          %327 = sbr.rel (%p325) target = $region70
        $region69: #{_forward.6} parent=61 // pred_region
          %328 = vst [vmem:[%s322] sm:$0xff] 0.0
          %329 = vst [vmem:[%s322 + $0x8] sm:$0xff] 0.0
          %330 = vst [vmem:[%s322 + $0x10] sm:$0xff] 0.0
          %331 = vst [vmem:[%s322 + $0x18] sm:$0xff] 0.0
          %332 = vst [vmem:[%s322 + $0x20] sm:$0xff] 0.0
          %333 = vst [vmem:[%s322 + $0x28] sm:$0xff] 0.0
          %334 = vst [vmem:[%s322 + $0x30] sm:$0xff] 0.0
          %335 = vst [vmem:[%s322 + $0x38] sm:$0xff] 0.0
          %336 = vst [vmem:[%s322 + $0x40] sm:$0xff] 0.0
          %337 = vst [vmem:[%s322 + $0x48] sm:$0xff] 0.0
          %338 = vst [vmem:[%s322 + $0x50] sm:$0xff] 0.0
          %339 = vst [vmem:[%s322 + $0x58] sm:$0xff] 0.0
          %340 = vst [vmem:[%s322 + $0x60] sm:$0xff] 0.0
          %341 = vst [vmem:[%s322 + $0x68] sm:$0xff] 0.0
          %342 = vst [vmem:[%s322 + $0x70] sm:$0xff] 0.0
          %343 = vst [vmem:[%s322 + $0x78] sm:$0xff] 0.0
          %344 = vst [vmem:[%s322 + $0x80] sm:$0xff] 0.0
          %345 = vst [vmem:[%s322 + $0x88] sm:$0xff] 0.0
          %346 = vst [vmem:[%s322 + $0x90] sm:$0xff] 0.0
          %347 = vst [vmem:[%s322 + $0x98] sm:$0xff] 0.0
          %348 = vst [vmem:[%s322 + $0xa0] sm:$0xff] 0.0
          %349 = vst [vmem:[%s322 + $0xa8] sm:$0xff] 0.0
          %350 = vst [vmem:[%s322 + $0xb0] sm:$0xff] 0.0
          %351 = vst [vmem:[%s322 + $0xb8] sm:$0xff] 0.0
          %352 = vst [vmem:[%s322 + $0xc0] sm:$0xff] 0.0
          %353 = vst [vmem:[%s322 + $0xc8] sm:$0xff] 0.0
          %354 = vst [vmem:[%s322 + $0xd0] sm:$0xff] 0.0
          %355 = vst [vmem:[%s322 + $0xd8] sm:$0xff] 0.0
          %356 = vst [vmem:[%s322 + $0xe0] sm:$0xff] 0.0
          %357 = vst [vmem:[%s322 + $0xe8] sm:$0xff] 0.0
          %358 = vst [vmem:[%s322 + $0xf0] sm:$0xff] 0.0
          %359 = vst [vmem:[%s322 + $0xf8] sm:$0xff] 0.0
        $region70: #{_forward.6} parent=61 // pred_fallthru
          _
        %s360 = smul.u32 %s18, 256
        %s361 = sshra.s32 %s360, 3
        %s362 = sand.u32 %s360, 7
        %s363 = smul.addr %s361, 4
        %s364 = scalar_lea.vmem %s1, %s363
        %v365 = vld [vmem:[%s364] sm:$0xf]
        %v366 = vld [vmem:[%s364 + $0x4] sm:$0xf]
        %v367 = vld [vmem:[%s364 + $0x8] sm:$0xf]
        %v368 = vld [vmem:[%s364 + $0xc] sm:$0xf]
        %v369 = vld [vmem:[%s364 + $0x10] sm:$0xf]
        %v370 = vld [vmem:[%s364 + $0x14] sm:$0xf]
        %v371 = vld [vmem:[%s364 + $0x18] sm:$0xf]
        %v372 = vld [vmem:[%s364 + $0x1c] sm:$0xf]
        %v373 = vld [vmem:[%s364 + $0x20] sm:$0xf]
        %v374 = vld [vmem:[%s364 + $0x24] sm:$0xf]
        %v375 = vld [vmem:[%s364 + $0x28] sm:$0xf]
        %v376 = vld [vmem:[%s364 + $0x2c] sm:$0xf]
        %v377 = vld [vmem:[%s364 + $0x30] sm:$0xf]
        %v378 = vld [vmem:[%s364 + $0x34] sm:$0xf]
        %v379 = vld [vmem:[%s364 + $0x38] sm:$0xf]
        %v380 = vld [vmem:[%s364 + $0x3c] sm:$0xf]
        %v381 = vld [vmem:[%s364 + $0x40] sm:$0xf]
        %v382 = vld [vmem:[%s364 + $0x44] sm:$0xf]
        %v383 = vld [vmem:[%s364 + $0x48] sm:$0xf]
        %v384 = vld [vmem:[%s364 + $0x4c] sm:$0xf]
        %v385 = vld [vmem:[%s364 + $0x50] sm:$0xf]
        %v386 = vld [vmem:[%s364 + $0x54] sm:$0xf]
        %v387 = vld [vmem:[%s364 + $0x58] sm:$0xf]
        %v388 = vld [vmem:[%s364 + $0x5c] sm:$0xf]
        %v389 = vld [vmem:[%s364 + $0x60] sm:$0xf]
        %v390 = vld [vmem:[%s364 + $0x64] sm:$0xf]
        %v391 = vld [vmem:[%s364 + $0x68] sm:$0xf]
        %v392 = vld [vmem:[%s364 + $0x6c] sm:$0xf]
        %v393 = vld [vmem:[%s364 + $0x70] sm:$0xf]
        %v394 = vld [vmem:[%s364 + $0x74] sm:$0xf]
        %v395 = vld [vmem:[%s364 + $0x78] sm:$0xf]
        %v396 = vld [vmem:[%s364 + $0x7c] sm:$0xf]
        %v397 = vld [vmem:[%s322] sm:$0xff]
        %v398 = vld [vmem:[%s322 + $0x8] sm:$0xff]
        %v399 = vld [vmem:[%s322 + $0x10] sm:$0xff]
        %v400 = vld [vmem:[%s322 + $0x18] sm:$0xff]
        %v401 = vld [vmem:[%s322 + $0x20] sm:$0xff]
        %v402 = vld [vmem:[%s322 + $0x28] sm:$0xff]
        %v403 = vld [vmem:[%s322 + $0x30] sm:$0xff]
        %v404 = vld [vmem:[%s322 + $0x38] sm:$0xff]
        %v405 = vld [vmem:[%s322 + $0x40] sm:$0xff]
        %v406 = vld [vmem:[%s322 + $0x48] sm:$0xff]
        %v407 = vld [vmem:[%s322 + $0x50] sm:$0xff]
        %v408 = vld [vmem:[%s322 + $0x58] sm:$0xff]
        %v409 = vld [vmem:[%s322 + $0x60] sm:$0xff]
        %v410 = vld [vmem:[%s322 + $0x68] sm:$0xff]
        %v411 = vld [vmem:[%s322 + $0x70] sm:$0xff]
        %v412 = vld [vmem:[%s322 + $0x78] sm:$0xff]
        %v413 = vld [vmem:[%s322 + $0x80] sm:$0xff]
        %v414 = vld [vmem:[%s322 + $0x88] sm:$0xff]
        %v415 = vld [vmem:[%s322 + $0x90] sm:$0xff]
        %v416 = vld [vmem:[%s322 + $0x98] sm:$0xff]
        %v417 = vld [vmem:[%s322 + $0xa0] sm:$0xff]
        %v418 = vld [vmem:[%s322 + $0xa8] sm:$0xff]
        %v419 = vld [vmem:[%s322 + $0xb0] sm:$0xff]
        %v420 = vld [vmem:[%s322 + $0xb8] sm:$0xff]
        %v421 = vld [vmem:[%s322 + $0xc0] sm:$0xff]
        %v422 = vld [vmem:[%s322 + $0xc8] sm:$0xff]
        %v423 = vld [vmem:[%s322 + $0xd0] sm:$0xff]
        %v424 = vld [vmem:[%s322 + $0xd8] sm:$0xff]
        %v425 = vld [vmem:[%s322 + $0xe0] sm:$0xff]
        %v426 = vld [vmem:[%s322 + $0xe8] sm:$0xff]
        %v427 = vld [vmem:[%s322 + $0xf0] sm:$0xff]
        %v428 = vld [vmem:[%s322 + $0xf8] sm:$0xff]
        %v429 = vld [vmem:[%s297] sm:$0xff]
        %v430 = vld [vmem:[%s297 + $0x8] sm:$0xff]
        %v431 = vld [vmem:[%s297 + $0x10] sm:$0xff]
        %v432 = vld [vmem:[%s297 + $0x18] sm:$0xff]
        %v433 = vld [vmem:[%s297 + $0x20] sm:$0xff]
        %v434 = vld [vmem:[%s297 + $0x28] sm:$0xff]
        %v435 = vld [vmem:[%s297 + $0x30] sm:$0xff]
        %v436 = vld [vmem:[%s297 + $0x38] sm:$0xff]
        %v437 = vld [vmem:[%s297 + $0x40] sm:$0xff]
        %v438 = vld [vmem:[%s297 + $0x48] sm:$0xff]
        %v439 = vld [vmem:[%s297 + $0x50] sm:$0xff]
        %v440 = vld [vmem:[%s297 + $0x58] sm:$0xff]
        %v441 = vld [vmem:[%s297 + $0x60] sm:$0xff]
        %v442 = vld [vmem:[%s297 + $0x68] sm:$0xff]
        %v443 = vld [vmem:[%s297 + $0x70] sm:$0xff]
        %v444 = vld [vmem:[%s297 + $0x78] sm:$0xff]
        %v445 = vld [vmem:[%s297 + $0x80] sm:$0xff]
        %v446 = vld [vmem:[%s297 + $0x88] sm:$0xff]
        %v447 = vld [vmem:[%s297 + $0x90] sm:$0xff]
        %v448 = vld [vmem:[%s297 + $0x98] sm:$0xff]
        %v449 = vld [vmem:[%s297 + $0xa0] sm:$0xff]
        %v450 = vld [vmem:[%s297 + $0xa8] sm:$0xff]
        %v451 = vld [vmem:[%s297 + $0xb0] sm:$0xff]
        %v452 = vld [vmem:[%s297 + $0xb8] sm:$0xff]
        %v453 = vld [vmem:[%s297 + $0xc0] sm:$0xff]
        %v454 = vld [vmem:[%s297 + $0xc8] sm:$0xff]
        %v455 = vld [vmem:[%s297 + $0xd0] sm:$0xff]
        %v456 = vld [vmem:[%s297 + $0xd8] sm:$0xff]
        %v457 = vld [vmem:[%s297 + $0xe0] sm:$0xff]
        %v458 = vld [vmem:[%s297 + $0xe8] sm:$0xff]
        %v459 = vld [vmem:[%s297 + $0xf0] sm:$0xff]
        %v460 = vld [vmem:[%s297 + $0xf8] sm:$0xff]
        %v493 = vunpack.c.l.b16 %v429
        %v494 = vunpack.c.h.b16 %v429
        %v495 = vunpack.c.l.b16 %v430
        %v496 = vunpack.c.h.b16 %v430
        %v497 = vunpack.c.l.b16 %v431
        %v498 = vunpack.c.h.b16 %v431
        %v499 = vunpack.c.l.b16 %v432
        %v500 = vunpack.c.h.b16 %v432
        %v501 = vunpack.c.l.b16 %v433
        %v502 = vunpack.c.h.b16 %v433
        %v503 = vunpack.c.l.b16 %v434
        %v504 = vunpack.c.h.b16 %v434
        %v505 = vunpack.c.l.b16 %v435
        %v506 = vunpack.c.h.b16 %v435
        %v507 = vunpack.c.l.b16 %v436
        %v508 = vunpack.c.h.b16 %v436
        %v509 = vunpack.c.l.b16 %v437
        %v510 = vunpack.c.h.b16 %v437
        %v511 = vunpack.c.l.b16 %v438
        %v512 = vunpack.c.h.b16 %v438
        %v513 = vunpack.c.l.b16 %v439
        %v514 = vunpack.c.h.b16 %v439
        %v515 = vunpack.c.l.b16 %v440
        %v516 = vunpack.c.h.b16 %v440
        %v517 = vunpack.c.l.b16 %v441
        %v518 = vunpack.c.h.b16 %v441
        %v519 = vunpack.c.l.b16 %v442
        %v520 = vunpack.c.h.b16 %v442
        %v521 = vunpack.c.l.b16 %v443
        %v522 = vunpack.c.h.b16 %v443
        %v523 = vunpack.c.l.b16 %v444
        %v524 = vunpack.c.h.b16 %v444
        %v525 = vunpack.c.l.b16 %v445
        %v526 = vunpack.c.h.b16 %v445
        %v527 = vunpack.c.l.b16 %v446
        %v528 = vunpack.c.h.b16 %v446
        %v529 = vunpack.c.l.b16 %v447
        %v530 = vunpack.c.h.b16 %v447
        %v531 = vunpack.c.l.b16 %v448
        %v532 = vunpack.c.h.b16 %v448
        %v533 = vunpack.c.l.b16 %v449
        %v534 = vunpack.c.h.b16 %v449
        %v535 = vunpack.c.l.b16 %v450
        %v536 = vunpack.c.h.b16 %v450
        %v537 = vunpack.c.l.b16 %v451
        %v538 = vunpack.c.h.b16 %v451
        %v539 = vunpack.c.l.b16 %v452
        %v540 = vunpack.c.h.b16 %v452
        %v541 = vunpack.c.l.b16 %v453
        %v542 = vunpack.c.h.b16 %v453
        %v543 = vunpack.c.l.b16 %v454
        %v544 = vunpack.c.h.b16 %v454
        %v545 = vunpack.c.l.b16 %v455
        %v546 = vunpack.c.h.b16 %v455
        %v547 = vunpack.c.l.b16 %v456
        %v548 = vunpack.c.h.b16 %v456
        %v549 = vunpack.c.l.b16 %v457
        %v550 = vunpack.c.h.b16 %v457
        %v551 = vunpack.c.l.b16 %v458
        %v552 = vunpack.c.h.b16 %v458
        %v553 = vunpack.c.l.b16 %v459
        %v554 = vunpack.c.h.b16 %v459
        %v555 = vunpack.c.l.b16 %v460
        %v556 = vunpack.c.h.b16 %v460
        %v557 = vpack.c.b16 %v495, %v493
        %v558 = vpack.c.b16 %v496, %v494
        %v559 = vpack.c.b16 %v499, %v497
        %v560 = vpack.c.b16 %v500, %v498
        %v561 = vpack.c.b16 %v503, %v501
        %v562 = vpack.c.b16 %v504, %v502
        %v563 = vpack.c.b16 %v507, %v505
        %v564 = vpack.c.b16 %v508, %v506
        %v565 = vpack.c.b16 %v511, %v509
        %v566 = vpack.c.b16 %v512, %v510
        %v567 = vpack.c.b16 %v515, %v513
        %v568 = vpack.c.b16 %v516, %v514
        %v569 = vpack.c.b16 %v519, %v517
        %v570 = vpack.c.b16 %v520, %v518
        %v571 = vpack.c.b16 %v523, %v521
        %v572 = vpack.c.b16 %v524, %v522
        %v573 = vpack.c.b16 %v527, %v525
        %v574 = vpack.c.b16 %v528, %v526
        %v575 = vpack.c.b16 %v531, %v529
        %v576 = vpack.c.b16 %v532, %v530
        %v577 = vpack.c.b16 %v535, %v533
        %v578 = vpack.c.b16 %v536, %v534
        %v579 = vpack.c.b16 %v539, %v537
        %v580 = vpack.c.b16 %v540, %v538
        %v581 = vpack.c.b16 %v543, %v541
        %v582 = vpack.c.b16 %v544, %v542
        %v583 = vpack.c.b16 %v547, %v545
        %v584 = vpack.c.b16 %v548, %v546
        %v585 = vpack.c.b16 %v551, %v549
        %v586 = vpack.c.b16 %v552, %v550
        %v587 = vpack.c.b16 %v555, %v553
        %v588 = vpack.c.b16 %v556, %v554
        %v653 = vunpack.c.l.b16 %v365
        %v654 = vunpack.c.l.b16 %v366
        %v655 = vunpack.c.l.b16 %v367
        %v656 = vunpack.c.l.b16 %v368
        %v657 = vunpack.c.l.b16 %v369
        %v658 = vunpack.c.l.b16 %v370
        %v659 = vunpack.c.l.b16 %v371
        %v660 = vunpack.c.l.b16 %v372
        %v661 = vunpack.c.l.b16 %v373
        %v662 = vunpack.c.l.b16 %v374
        %v663 = vunpack.c.l.b16 %v375
        %v664 = vunpack.c.l.b16 %v376
        %v665 = vunpack.c.l.b16 %v377
        %v666 = vunpack.c.l.b16 %v378
        %v667 = vunpack.c.l.b16 %v379
        %v668 = vunpack.c.l.b16 %v380
        %v669 = vunpack.c.l.b16 %v381
        %v670 = vunpack.c.l.b16 %v382
        %v671 = vunpack.c.l.b16 %v383
        %v672 = vunpack.c.l.b16 %v384
        %v673 = vunpack.c.l.b16 %v385
        %v674 = vunpack.c.l.b16 %v386
        %v675 = vunpack.c.l.b16 %v387
        %v676 = vunpack.c.l.b16 %v388
        %v677 = vunpack.c.l.b16 %v389
        %v678 = vunpack.c.l.b16 %v390
        %v679 = vunpack.c.l.b16 %v391
        %v680 = vunpack.c.l.b16 %v392
        %v681 = vunpack.c.l.b16 %v393
        %v682 = vunpack.c.l.b16 %v394
        %v683 = vunpack.c.l.b16 %v395
        %v684 = vunpack.c.l.b16 %v396
        %v685 = vpack.c.b16 %v654, %v653
        %v686 = vpack.c.b16 %v656, %v655
        %v687 = vpack.c.b16 %v658, %v657
        %v688 = vpack.c.b16 %v660, %v659
        %v689 = vpack.c.b16 %v662, %v661
        %v690 = vpack.c.b16 %v664, %v663
        %v691 = vpack.c.b16 %v666, %v665
        %v692 = vpack.c.b16 %v668, %v667
        %v693 = vpack.c.b16 %v670, %v669
        %v694 = vpack.c.b16 %v672, %v671
        %v695 = vpack.c.b16 %v674, %v673
        %v696 = vpack.c.b16 %v676, %v675
        %v697 = vpack.c.b16 %v678, %v677
        %v698 = vpack.c.b16 %v680, %v679
        %v699 = vpack.c.b16 %v682, %v681
        %v700 = vpack.c.b16 %v684, %v683
        %717 = vmatpush.bf16.msra.mxu0 %v692
        %718 = vmatpush.bf16.msra.mxu0 %v691
        %719 = vmatpush.bf16.msra.mxu0 %v690
        %720 = vmatpush.bf16.msra.mxu0 %v689
        %721 = vmatpush.bf16.msra.mxu0 %v688
        %722 = vmatpush.bf16.msra.mxu0 %v687
        %723 = vmatpush.bf16.msra.mxu0 %v686
        %724 = vmatpush.bf16.msra.mxu0 %v685
        %725 = vmatmul.bf16.gmra.mxu0 %v557
        %v726 = vpop.f32.mrf.mxu0
        %v727 = vadd.f32 0.0, %v726
        %v728 = vpop.f32.mrf.mxu0
        %v729 = vadd.f32 0.0, %v728
        %730 = vmatmul.bf16.gmra.mxu0 %v559
        %v731 = vpop.f32.mrf.mxu0
        %v732 = vadd.f32 0.0, %v731
        %v733 = vpop.f32.mrf.mxu0
        %v734 = vadd.f32 0.0, %v733
        %735 = vmatmul.bf16.gmra.mxu0 %v561
        %v736 = vpop.f32.mrf.mxu0
        %v737 = vadd.f32 0.0, %v736
        %v738 = vpop.f32.mrf.mxu0
        %v739 = vadd.f32 0.0, %v738
        %740 = vmatmul.bf16.gmra.mxu0 %v563
        %v741 = vpop.f32.mrf.mxu0
        %v742 = vadd.f32 0.0, %v741
        %v743 = vpop.f32.mrf.mxu0
        %v744 = vadd.f32 0.0, %v743
        %745 = vmatmul.bf16.gmra.mxu0 %v565
        %v746 = vpop.f32.mrf.mxu0
        %v747 = vadd.f32 0.0, %v746
        %v748 = vpop.f32.mrf.mxu0
        %v749 = vadd.f32 0.0, %v748
        %750 = vmatmul.bf16.gmra.mxu0 %v567
        %v751 = vpop.f32.mrf.mxu0
        %v752 = vadd.f32 0.0, %v751
        %v753 = vpop.f32.mrf.mxu0
        %v754 = vadd.f32 0.0, %v753
        %755 = vmatmul.bf16.gmra.mxu0 %v569
        %v756 = vpop.f32.mrf.mxu0
        %v757 = vadd.f32 0.0, %v756
        %v758 = vpop.f32.mrf.mxu0
        %v759 = vadd.f32 0.0, %v758
        %760 = vmatmul.bf16.gmra.mxu0 %v571
        %v761 = vpop.f32.mrf.mxu0
        %v762 = vadd.f32 0.0, %v761
        %v763 = vpop.f32.mrf.mxu0
        %v764 = vadd.f32 0.0, %v763
        %765 = vmatmul.bf16.gmra.mxu0 %v573
        %v766 = vpop.f32.mrf.mxu0
        %v767 = vadd.f32 0.0, %v766
        %v768 = vpop.f32.mrf.mxu0
        %v769 = vadd.f32 0.0, %v768
        %770 = vmatmul.bf16.gmra.mxu0 %v575
        %v771 = vpop.f32.mrf.mxu0
        %v772 = vadd.f32 0.0, %v771
        %v773 = vpop.f32.mrf.mxu0
        %v774 = vadd.f32 0.0, %v773
        %775 = vmatmul.bf16.gmra.mxu0 %v577
        %v776 = vpop.f32.mrf.mxu0
        %v777 = vadd.f32 0.0, %v776
        %v778 = vpop.f32.mrf.mxu0
        %v779 = vadd.f32 0.0, %v778
        %780 = vmatmul.bf16.gmra.mxu0 %v579
        %v781 = vpop.f32.mrf.mxu0
        %v782 = vadd.f32 0.0, %v781
        %v783 = vpop.f32.mrf.mxu0
        %v784 = vadd.f32 0.0, %v783
        %785 = vmatmul.bf16.gmra.mxu0 %v581
        %v786 = vpop.f32.mrf.mxu0
        %v787 = vadd.f32 0.0, %v786
        %v788 = vpop.f32.mrf.mxu0
        %v789 = vadd.f32 0.0, %v788
        %790 = vmatmul.bf16.gmra.mxu0 %v583
        %v791 = vpop.f32.mrf.mxu0
        %v792 = vadd.f32 0.0, %v791
        %v793 = vpop.f32.mrf.mxu0
        %v794 = vadd.f32 0.0, %v793
        %795 = vmatmul.bf16.gmra.mxu0 %v585
        %v796 = vpop.f32.mrf.mxu0
        %v797 = vadd.f32 0.0, %v796
        %v798 = vpop.f32.mrf.mxu0
        %v799 = vadd.f32 0.0, %v798
        %800 = vmatmul.bf16.gmra.mxu0 %v587
        %v801 = vpop.f32.mrf.mxu0
        %v802 = vadd.f32 0.0, %v801
        %v803 = vpop.f32.mrf.mxu0
        %v804 = vadd.f32 0.0, %v803
        %805 = vdwg.mxu0
        %806 = vmatpush.bf16.msra.mxu0 %v700
        %807 = vmatpush.bf16.msra.mxu0 %v699
        %808 = vmatpush.bf16.msra.mxu0 %v698
        %809 = vmatpush.bf16.msra.mxu0 %v697
        %810 = vmatpush.bf16.msra.mxu0 %v696
        %811 = vmatpush.bf16.msra.mxu0 %v695
        %812 = vmatpush.bf16.msra.mxu0 %v694
        %813 = vmatpush.bf16.msra.mxu0 %v693
        %814 = vmatmul.bf16.gmra.mxu0 %v558
        %v815 = vpop.f32.mrf.mxu0
        %v816 = vadd.f32 %v727, %v815
        %v817 = vpop.f32.mrf.mxu0
        %v818 = vadd.f32 %v729, %v817
        %819 = vmatmul.bf16.gmra.mxu0 %v560
        %v820 = vpop.f32.mrf.mxu0
        %v821 = vadd.f32 %v732, %v820
        %v822 = vpop.f32.mrf.mxu0
        %v823 = vadd.f32 %v734, %v822
        %824 = vmatmul.bf16.gmra.mxu0 %v562
        %v825 = vpop.f32.mrf.mxu0
        %v826 = vadd.f32 %v737, %v825
        %v827 = vpop.f32.mrf.mxu0
        %v828 = vadd.f32 %v739, %v827
        %829 = vmatmul.bf16.gmra.mxu0 %v564
        %v830 = vpop.f32.mrf.mxu0
        %v831 = vadd.f32 %v742, %v830
        %v832 = vpop.f32.mrf.mxu0
        %v833 = vadd.f32 %v744, %v832
        %834 = vmatmul.bf16.gmra.mxu0 %v566
        %v835 = vpop.f32.mrf.mxu0
        %v836 = vadd.f32 %v747, %v835
        %v837 = vpop.f32.mrf.mxu0
        %v838 = vadd.f32 %v749, %v837
        %839 = vmatmul.bf16.gmra.mxu0 %v568
        %v840 = vpop.f32.mrf.mxu0
        %v841 = vadd.f32 %v752, %v840
        %v842 = vpop.f32.mrf.mxu0
        %v843 = vadd.f32 %v754, %v842
        %844 = vmatmul.bf16.gmra.mxu0 %v570
        %v845 = vpop.f32.mrf.mxu0
        %v846 = vadd.f32 %v757, %v845
        %v847 = vpop.f32.mrf.mxu0
        %v848 = vadd.f32 %v759, %v847
        %849 = vmatmul.bf16.gmra.mxu0 %v572
        %v850 = vpop.f32.mrf.mxu0
        %v851 = vadd.f32 %v762, %v850
        %v852 = vpop.f32.mrf.mxu0
        %v853 = vadd.f32 %v764, %v852
        %854 = vmatmul.bf16.gmra.mxu0 %v574
        %v855 = vpop.f32.mrf.mxu0
        %v856 = vadd.f32 %v767, %v855
        %v857 = vpop.f32.mrf.mxu0
        %v858 = vadd.f32 %v769, %v857
        %859 = vmatmul.bf16.gmra.mxu0 %v576
        %v860 = vpop.f32.mrf.mxu0
        %v861 = vadd.f32 %v772, %v860
        %v862 = vpop.f32.mrf.mxu0
        %v863 = vadd.f32 %v774, %v862
        %864 = vmatmul.bf16.gmra.mxu0 %v578
        %v865 = vpop.f32.mrf.mxu0
        %v866 = vadd.f32 %v777, %v865
        %v867 = vpop.f32.mrf.mxu0
        %v868 = vadd.f32 %v779, %v867
        %869 = vmatmul.bf16.gmra.mxu0 %v580
        %v870 = vpop.f32.mrf.mxu0
        %v871 = vadd.f32 %v782, %v870
        %v872 = vpop.f32.mrf.mxu0
        %v873 = vadd.f32 %v784, %v872
        %874 = vmatmul.bf16.gmra.mxu0 %v582
        %v875 = vpop.f32.mrf.mxu0
        %v876 = vadd.f32 %v787, %v875
        %v877 = vpop.f32.mrf.mxu0
        %v878 = vadd.f32 %v789, %v877
        %879 = vmatmul.bf16.gmra.mxu0 %v584
        %v880 = vpop.f32.mrf.mxu0
        %v881 = vadd.f32 %v792, %v880
        %v882 = vpop.f32.mrf.mxu0
        %v883 = vadd.f32 %v794, %v882
        %884 = vmatmul.bf16.gmra.mxu0 %v586
        %v885 = vpop.f32.mrf.mxu0
        %v886 = vadd.f32 %v797, %v885
        %v887 = vpop.f32.mrf.mxu0
        %v888 = vadd.f32 %v799, %v887
        %889 = vmatmul.bf16.gmra.mxu0 %v588
        %v890 = vpop.f32.mrf.mxu0
        %v891 = vadd.f32 %v802, %v890
        %v892 = vpop.f32.mrf.mxu0
        %v893 = vadd.f32 %v804, %v892
        %894 = vdwg.mxu0
        %v895 = vadd.f32 %v397, %v816
        %v896 = vadd.f32 %v398, %v818
        %v897 = vadd.f32 %v399, %v821
        %v898 = vadd.f32 %v400, %v823
        %v899 = vadd.f32 %v401, %v826
        %v900 = vadd.f32 %v402, %v828
        %v901 = vadd.f32 %v403, %v831
        %v902 = vadd.f32 %v404, %v833
        %v903 = vadd.f32 %v405, %v836
        %v904 = vadd.f32 %v406, %v838
        %v905 = vadd.f32 %v407, %v841
        %v906 = vadd.f32 %v408, %v843
        %v907 = vadd.f32 %v409, %v846
        %v908 = vadd.f32 %v410, %v848
        %v909 = vadd.f32 %v411, %v851
        %v910 = vadd.f32 %v412, %v853
        %v911 = vadd.f32 %v413, %v856
        %v912 = vadd.f32 %v414, %v858
        %v913 = vadd.f32 %v415, %v861
        %v914 = vadd.f32 %v416, %v863
        %v915 = vadd.f32 %v417, %v866
        %v916 = vadd.f32 %v418, %v868
        %v917 = vadd.f32 %v419, %v871
        %v918 = vadd.f32 %v420, %v873
        %v919 = vadd.f32 %v421, %v876
        %v920 = vadd.f32 %v422, %v878
        %v921 = vadd.f32 %v423, %v881
        %v922 = vadd.f32 %v424, %v883
        %v923 = vadd.f32 %v425, %v886
        %v924 = vadd.f32 %v426, %v888
        %v925 = vadd.f32 %v427, %v891
        %v926 = vadd.f32 %v428, %v893
        %927 = vst [vmem:[%s322] sm:$0xff] %v895
        %928 = vst [vmem:[%s322 + $0x8] sm:$0xff] %v896
        %929 = vst [vmem:[%s322 + $0x10] sm:$0xff] %v897
        %930 = vst [vmem:[%s322 + $0x18] sm:$0xff] %v898
        %931 = vst [vmem:[%s322 + $0x20] sm:$0xff] %v899
        %932 = vst [vmem:[%s322 + $0x28] sm:$0xff] %v900
        %933 = vst [vmem:[%s322 + $0x30] sm:$0xff] %v901
        %934 = vst [vmem:[%s322 + $0x38] sm:$0xff] %v902
        %935 = vst [vmem:[%s322 + $0x40] sm:$0xff] %v903
        %936 = vst [vmem:[%s322 + $0x48] sm:$0xff] %v904
        %937 = vst [vmem:[%s322 + $0x50] sm:$0xff] %v905
        %938 = vst [vmem:[%s322 + $0x58] sm:$0xff] %v906
        %939 = vst [vmem:[%s322 + $0x60] sm:$0xff] %v907
        %940 = vst [vmem:[%s322 + $0x68] sm:$0xff] %v908
        %941 = vst [vmem:[%s322 + $0x70] sm:$0xff] %v909
        %942 = vst [vmem:[%s322 + $0x78] sm:$0xff] %v910
        %943 = vst [vmem:[%s322 + $0x80] sm:$0xff] %v911
        %944 = vst [vmem:[%s322 + $0x88] sm:$0xff] %v912
        %945 = vst [vmem:[%s322 + $0x90] sm:$0xff] %v913
        %946 = vst [vmem:[%s322 + $0x98] sm:$0xff] %v914
        %947 = vst [vmem:[%s322 + $0xa0] sm:$0xff] %v915
        %948 = vst [vmem:[%s322 + $0xa8] sm:$0xff] %v916
        %949 = vst [vmem:[%s322 + $0xb0] sm:$0xff] %v917
        %950 = vst [vmem:[%s322 + $0xb8] sm:$0xff] %v918
        %951 = vst [vmem:[%s322 + $0xc0] sm:$0xff] %v919
        %952 = vst [vmem:[%s322 + $0xc8] sm:$0xff] %v920
        %953 = vst [vmem:[%s322 + $0xd0] sm:$0xff] %v921
        %954 = vst [vmem:[%s322 + $0xd8] sm:$0xff] %v922
        %955 = vst [vmem:[%s322 + $0xe0] sm:$0xff] %v923
        %956 = vst [vmem:[%s322 + $0xe8] sm:$0xff] %v924
        %957 = vst [vmem:[%s322 + $0xf0] sm:$0xff] %v925
        %958 = vst [vmem:[%s322 + $0xf8] sm:$0xff] %v926
        %s959 = smul.u32 32, %s17
        %p960 = scmp.lt.s32.totalorder %s959, 31
        %s961 = scalar_select %p960, %s959, 31
        %s962 = smul.addr %s961, 8
        %s963 = scalar_lea.vmem %s2, %s962
        // Predicated region
        $region71: #{_forward.6} parent=61 // pred_check
          %p964 = pneg %p92
        $region72: #{_forward.6} parent=61 // pred_check_branch
          %966 = sbr.rel (%p964) target = $region74
        $region73: #{_forward.6} parent=61 // pred_region
          %s967 = smul.u32 32, %s17
        $region74: #{_forward.6} parent=61 // pred_fallthru
          _
        // Predicated region
        $region75: #{_forward.6} parent=61 // pred_check
          %p968 = pneg %p92
        $region76: #{_forward.6} parent=61 // pred_check_branch
          %970 = sbr.rel (%p968) target = $region78
        $region77: #{_forward.6} parent=61 // pred_region
          %s971 = smul.u32 32, %s17
          %p972 = scmp.lt.s32.totalorder %s971, 31
          %s973 = scalar_select %p972, %s971, 31
          %s974 = smul.addr %s973, 8
          %s975 = scalar_lea.vmem %s2, %s974
        $region78: #{_forward.6} parent=61 // pred_fallthru
          _
      $region62: #{_forward.6} parent=5 // pred_fallthru
        _
      %p976 = scmp.le.s32.totalorder 2, %s8
      // Predicated region
      $region79: #{_forward.6} parent=5 // pred_check
        %p977 = pneg %p976
      $region80: #{_forward.6} parent=5 // pred_check_branch
        %979 = sbr.rel (%p977) target = $region82
      $region81: #{_forward.6} parent=5 // pred_region
        %s980 = ssub.s32 %s8, 2
      $region82: #{_forward.6} parent=5 // pred_fallthru
        _
    $region6: #{_forward.6} parent=1 // loop_footer
      %s12 = sadd.s32 1, %s8
    $region7: #{_forward.6} parent=1 // loop_footer_branch
      %7 = sbr.rel target = $region3
    $region8: #{_forward.6} parent=1 // loop_exit
      _

// kernel: _forward.9
$region0: #{_forward.9}
  #allocation0 [shape = 'u32[]', space=smem, size = 0x4, offset = 0x4, fixed_abs, tag = 'smem constant byte address 0x4 - core index']
  #allocation1 [shape = 'u32[72,128]{1,0:T(1,128)}', space=vmem, size = 0x9000, scoped, tag = 'internal scratch']
  %s0 = inlined_call_operand.vmem [shape: bf16[512,256], index: 0, kind: input, shape index: {}]
  %s1 = inlined_call_operand.vmem [shape: bf16[256,128], index: 1, kind: input, shape index: {}]
  %s2 = inlined_call_operand.vmem [shape: f32[512,128], index: 2, kind: output, shape index: {}]
  %s3 = sld [smem:[#allocation0]]
  $region45: #{_forward.9} parent=0
    _
  %s5 = ssub.s32 1, %s3
  %s6 = scalar_select 0, %s5, %s3
  loop: start=0, step=1, limit=4
  $region2: #{_forward.9} parent=0 // loop_pre_header
    _
  $region3: #{_forward.9} parent=0 // loop_header
    %s8 = sphi 0, %s12
    %p9 = scmp.ge.s32.totalorder %s8, 4
    %s15 = sphi 0, %s27
    %s16 = sphi 0, %s23
    %s17 = sphi 0, %s15
    %s18 = sphi 0, %s16
    %s19 = sphi 0, %s17
    %s20 = sphi 0, %s18
    %s32 = sphi 0, %s34
    %s35 = sphi 0, %s32
    %s36 = sphi 0, %s35
    %s52 = sphi 0, %s36
    %s56 = sphi 0, %s56
    %s58 = sphi 0, %s56
    %s59 = sphi 0, %s58
    %s73 = sphi 0, %s59
    %s79 = sphi 0, %s81
    %s82 = sphi 0, %s79
    %s83 = sphi 0, %s82
    %s99 = sphi 0, %s83
  $region4: #{_forward.9} parent=0 // loop_header_branch
    %11 = sbr.rel (%p9) target = $region8
  $region5: #{_forward.9} parent=0 // loop_body
    %s13 = ssub.s32 %s8, 1
    %s14 = ssub.s32 %s8, 2
    %s21 = sadd.s32 1, %s16
    %p22 = scmp.ge.s32.totalorder %s21, 1
    %s23 = scalar_select %p22, 0, %s21
    %s24 = sadd.s32 1, %s15
    %s25 = scalar_select %p22, %s24, %s15
    %p26 = scmp.ge.s32.totalorder %s25, 2
    %s27 = scalar_select %p26, 0, %s25
    %s28 = ssub.s32 %s15, %s27
    %s29 = ssub.s32 %s16, %s23
    %s30 = sor.u32 %s28, %s29
    %p31 = scmp.eq.s32.totalorder %s30, 0
    %s33 = sadd.s32 %s32, 1
    %s34 = scalar_select %p31, %s32, %s33
    %p37 = pneg %p31
    %p38 = scmp.eq.s32.totalorder %s8, 1
    %p39 = por %p37, %p38
    %p40 = scmp.ne.s32.totalorder %s32, %s35
    %p41 = scmp.eq.s32.totalorder %s8, 0
    %p42 = por %p40, %p41
    %p43 = scmp.ne.s32.totalorder %s32, %s35
    %p44 = scmp.eq.s32.totalorder %s13, 1
    %p45 = por %p43, %p44
    %p46 = scmp.ne.s32.totalorder %s35, %s36
    %p47 = scmp.eq.s32.totalorder %s13, 0
    %p48 = por %p46, %p47
    %p49 = scmp.ne.s32.totalorder %s35, %s36
    %p50 = scmp.eq.s32.totalorder %s14, 1
    %p51 = por %p49, %p50
    %p53 = scmp.ne.s32.totalorder %s36, %s52
    %p54 = scmp.eq.s32.totalorder %s14, 0
    %p55 = por %p53, %p54
    %s57 = sadd.s32 %s56, 1
    %p60 = scmp.eq.s32.totalorder %s8, 1
    %p61 = scmp.ne.s32.totalorder %s56, %s58
    %p62 = scmp.eq.s32.totalorder %s8, 0
    %p63 = por %p61, %p62
    %p64 = scmp.ne.s32.totalorder %s56, %s58
    %p65 = scmp.eq.s32.totalorder %s13, 1
    %p66 = por %p64, %p65
    %p67 = scmp.ne.s32.totalorder %s58, %s59
    %p68 = scmp.eq.s32.totalorder %s13, 0
    %p69 = por %p67, %p68
    %p70 = scmp.ne.s32.totalorder %s58, %s59
    %p71 = scmp.eq.s32.totalorder %s14, 1
    %p72 = por %p70, %p71
    %p74 = scmp.ne.s32.totalorder %s59, %s73
    %p75 = scmp.eq.s32.totalorder %s14, 0
    %p76 = por %p74, %p75
    %s77 = ssub.s32 %s15, %s27
    %p78 = scmp.eq.s32.totalorder %s77, 0
    %s80 = sadd.s32 %s79, 1
    %s81 = scalar_select %p78, %s79, %s80
    %p84 = pneg %p78
    %p85 = scmp.eq.s32.totalorder %s8, 1
    %p86 = por %p84, %p85
    %p87 = scmp.ne.s32.totalorder %s79, %s82
    %p88 = scmp.eq.s32.totalorder %s8, 0
    %p89 = por %p87, %p88
    %p90 = scmp.ne.s32.totalorder %s79, %s82
    %p91 = scmp.eq.s32.totalorder %s13, 1
    %p92 = por %p90, %p91
    %p93 = scmp.ne.s32.totalorder %s82, %s83
    %p94 = scmp.eq.s32.totalorder %s13, 0
    %p95 = por %p93, %p94
    %p96 = scmp.ne.s32.totalorder %s82, %s83
    %p97 = scmp.eq.s32.totalorder %s14, 1
    %p98 = por %p96, %p97
    %p100 = scmp.ne.s32.totalorder %s83, %s99
    %p101 = scmp.eq.s32.totalorder %s14, 0
    %p102 = por %p100, %p101
    %p103 = scmp.le.s32.totalorder 1, %s8
    %p104 = scmp.lt.s32.totalorder %s8, 3
    %p105 = pnand %p103, %p104
    %p106 = pneg %p105
    // Predicated region
    $region9: #{_forward.9} parent=5 // pred_check
      _
    $region10: #{_forward.9} parent=5 // pred_check_branch
      %108 = sbr.rel (%p105) target = $region12
    $region11: #{_forward.9} parent=5 // pred_region
      %s109 = ssub.s32 %s8, 1
      // Predicated region
      $region13: #{_forward.9} parent=11 // pred_check
        %p110 = pneg %p69
      $region14: #{_forward.9} parent=11 // pred_check_branch
        %112 = sbr.rel (%p110) target = $region16
      $region15: #{_forward.9} parent=11 // pred_region
        _
      $region16: #{_forward.9} parent=11 // pred_fallthru
        _
    $region12: #{_forward.9} parent=5 // pred_fallthru
      _
    %p113 = scmp.lt.s32.totalorder %s8, 2
    // Predicated region
    $region17: #{_forward.9} parent=5 // pred_check
      %p114 = pneg %p113
    $region18: #{_forward.9} parent=5 // pred_check_branch
      %116 = sbr.rel (%p114) target = $region20
    $region19: #{_forward.9} parent=5 // pred_region
      // Predicated region
      $region21: #{_forward.9} parent=19 // pred_check
        %p117 = pneg %p42
      $region22: #{_forward.9} parent=19 // pred_check_branch
        %119 = sbr.rel (%p117) target = $region24
      $region23: #{_forward.9} parent=19 // pred_region
        %s120 = smul.u32 32, %s15
        %s121 = smul.u32 2, %s16
        %p122 = scmp.lt.s32.totalorder %s120, 63
        %s123 = scalar_select %p122, %s120, 63
        %p124 = scmp.lt.s32.totalorder %s121, 1
        %s125 = scalar_select %p124, %s121, 1
        %s126 = smul.addr %s123, 2
        %s127 = sadd.s32 %s125, %s126
        %s128 = smul.addr %s127, 4
        %s129 = scalar_lea.vmem %s0, %s128
        %s130 = smul.u32 32, %s15
        %s131 = smul.u32 2, %s16
      $region24: #{_forward.9} parent=19 // pred_fallthru
        _
    $region20: #{_forward.9} parent=5 // pred_fallthru
      _
    %p132 = scmp.le.s32.totalorder 1, %s8
    %p133 = scmp.lt.s32.totalorder %s8, 3
    %p134 = pnand %p132, %p133
    %p135 = pneg %p134
    // Predicated region
    $region25: #{_forward.9} parent=5 // pred_check
      _
    $region26: #{_forward.9} parent=5 // pred_check_branch
      %137 = sbr.rel (%p134) target = $region28
    $region27: #{_forward.9} parent=5 // pred_region
      %s138 = ssub.s32 %s8, 1
      %s139 = smul.u32 32, %s17
      %s140 = smul.u32 2, %s18
      %p141 = scmp.lt.s32.totalorder %s139, 63
      %s142 = scalar_select %p141, %s139, 63
      %p143 = scmp.lt.s32.totalorder %s140, 1
      %s144 = scalar_select %p143, %s140, 1
      %s145 = smul.addr %s142, 2
      %s146 = sadd.s32 %s144, %s145
      %s147 = smul.addr %s146, 4
      %s148 = scalar_lea.vmem %s0, %s147
      %p149 = pneg %p48
      %p150 = pneg %p45
      %p151 = pneg %p69
      %p152 = pneg %p66
      %p153 = pneg %p95
      %p154 = pneg %p92
      %s155 = smul.u32 32, %s17
      %p156 = scmp.lt.s32.totalorder %s155, 63
      %s157 = scalar_select %p156, %s155, 63
      %s158 = smul.addr %s157, 8
      %s159 = scalar_lea.vmem %s2, %s158
      %s160 = smul.u32 32, %s17
      %s161 = smul.u32 2, %s18
      %p162 = scmp.lt.s32.totalorder %s160, 63
      %s163 = scalar_select %p162, %s160, 63
      %p164 = scmp.lt.s32.totalorder %s161, 1
      %s165 = scalar_select %p164, %s161, 1
      %s166 = smul.addr %s163, 2
      %s167 = sadd.s32 %s165, %s166
      %s168 = smul.addr %s167, 4
      %s169 = scalar_lea.vmem %s0, %s168
      %s170 = smul.u32 32, %s17
      %s171 = smul.u32 2, %s18
      %s172 = smul.u32 32, %s17
      %p173 = scmp.lt.s32.totalorder %s172, 63
      %s174 = scalar_select %p173, %s172, 63
      %s175 = smul.addr %s174, 8
      %s176 = scalar_lea.vmem %s2, %s175
      %s177 = smul.u32 32, %s17
      %p178 = scmp.eq.s32.totalorder %s18, 0
      // Predicated region
      $region29: #{_forward.9} parent=27 // pred_check
        %p179 = pneg %p178
      $region30: #{_forward.9} parent=27 // pred_check_branch
        %181 = sbr.rel (%p179) target = $region32
      $region31: #{_forward.9} parent=27 // pred_region
        %182 = vst [vmem:[%s176] sm:$0xff] 0.0
        %183 = vst [vmem:[%s176 + $0x8] sm:$0xff] 0.0
        %184 = vst [vmem:[%s176 + $0x10] sm:$0xff] 0.0
        %185 = vst [vmem:[%s176 + $0x18] sm:$0xff] 0.0
        %186 = vst [vmem:[%s176 + $0x20] sm:$0xff] 0.0
        %187 = vst [vmem:[%s176 + $0x28] sm:$0xff] 0.0
        %188 = vst [vmem:[%s176 + $0x30] sm:$0xff] 0.0
        %189 = vst [vmem:[%s176 + $0x38] sm:$0xff] 0.0
        %190 = vst [vmem:[%s176 + $0x40] sm:$0xff] 0.0
        %191 = vst [vmem:[%s176 + $0x48] sm:$0xff] 0.0
        %192 = vst [vmem:[%s176 + $0x50] sm:$0xff] 0.0
        %193 = vst [vmem:[%s176 + $0x58] sm:$0xff] 0.0
        %194 = vst [vmem:[%s176 + $0x60] sm:$0xff] 0.0
        %195 = vst [vmem:[%s176 + $0x68] sm:$0xff] 0.0
        %196 = vst [vmem:[%s176 + $0x70] sm:$0xff] 0.0
        %197 = vst [vmem:[%s176 + $0x78] sm:$0xff] 0.0
        %198 = vst [vmem:[%s176 + $0x80] sm:$0xff] 0.0
        %199 = vst [vmem:[%s176 + $0x88] sm:$0xff] 0.0
        %200 = vst [vmem:[%s176 + $0x90] sm:$0xff] 0.0
        %201 = vst [vmem:[%s176 + $0x98] sm:$0xff] 0.0
        %202 = vst [vmem:[%s176 + $0xa0] sm:$0xff] 0.0
        %203 = vst [vmem:[%s176 + $0xa8] sm:$0xff] 0.0
        %204 = vst [vmem:[%s176 + $0xb0] sm:$0xff] 0.0
        %205 = vst [vmem:[%s176 + $0xb8] sm:$0xff] 0.0
        %206 = vst [vmem:[%s176 + $0xc0] sm:$0xff] 0.0
        %207 = vst [vmem:[%s176 + $0xc8] sm:$0xff] 0.0
        %208 = vst [vmem:[%s176 + $0xd0] sm:$0xff] 0.0
        %209 = vst [vmem:[%s176 + $0xd8] sm:$0xff] 0.0
        %210 = vst [vmem:[%s176 + $0xe0] sm:$0xff] 0.0
        %211 = vst [vmem:[%s176 + $0xe8] sm:$0xff] 0.0
        %212 = vst [vmem:[%s176 + $0xf0] sm:$0xff] 0.0
        %213 = vst [vmem:[%s176 + $0xf8] sm:$0xff] 0.0
      $region32: #{_forward.9} parent=27 // pred_fallthru
        _
      %v214 = vld [vmem:[%s1] sm:$0xf]
      %v215 = vld [vmem:[%s1 + $0x4] sm:$0xf]
      %v216 = vld [vmem:[%s1 + $0x8] sm:$0xf]
      %v217 = vld [vmem:[%s1 + $0xc] sm:$0xf]
      %v218 = vld [vmem:[%s1 + $0x10] sm:$0xf]
      %v219 = vld [vmem:[%s1 + $0x14] sm:$0xf]
      %v220 = vld [vmem:[%s1 + $0x18] sm:$0xf]
      %v221 = vld [vmem:[%s1 + $0x1c] sm:$0xf]
      %v222 = vld [vmem:[%s1 + $0x20] sm:$0xf]
      %v223 = vld [vmem:[%s1 + $0x24] sm:$0xf]
      %v224 = vld [vmem:[%s1 + $0x28] sm:$0xf]
      %v225 = vld [vmem:[%s1 + $0x2c] sm:$0xf]
      %v226 = vld [vmem:[%s1 + $0x30] sm:$0xf]
      %v227 = vld [vmem:[%s1 + $0x34] sm:$0xf]
      %v228 = vld [vmem:[%s1 + $0x38] sm:$0xf]
      %v229 = vld [vmem:[%s1 + $0x3c] sm:$0xf]
      %v230 = vld [vmem:[%s1 + $0x40] sm:$0xf]
      %v231 = vld [vmem:[%s1 + $0x44] sm:$0xf]
      %v232 = vld [vmem:[%s1 + $0x48] sm:$0xf]
      %v233 = vld [vmem:[%s1 + $0x4c] sm:$0xf]
      %v234 = vld [vmem:[%s1 + $0x50] sm:$0xf]
      %v235 = vld [vmem:[%s1 + $0x54] sm:$0xf]
      %v236 = vld [vmem:[%s1 + $0x58] sm:$0xf]
      %v237 = vld [vmem:[%s1 + $0x5c] sm:$0xf]
      %v238 = vld [vmem:[%s1 + $0x60] sm:$0xf]
      %v239 = vld [vmem:[%s1 + $0x64] sm:$0xf]
      %v240 = vld [vmem:[%s1 + $0x68] sm:$0xf]
      %v241 = vld [vmem:[%s1 + $0x6c] sm:$0xf]
      %v242 = vld [vmem:[%s1 + $0x70] sm:$0xf]
      %v243 = vld [vmem:[%s1 + $0x74] sm:$0xf]
      %v244 = vld [vmem:[%s1 + $0x78] sm:$0xf]
      %v245 = vld [vmem:[%s1 + $0x7c] sm:$0xf]
      %v246 = vld [vmem:[%s176] sm:$0xff]
      %v247 = vld [vmem:[%s176 + $0x8] sm:$0xff]
      %v248 = vld [vmem:[%s176 + $0x10] sm:$0xff]
      %v249 = vld [vmem:[%s176 + $0x18] sm:$0xff]
      %v250 = vld [vmem:[%s176 + $0x20] sm:$0xff]
      %v251 = vld [vmem:[%s176 + $0x28] sm:$0xff]
      %v252 = vld [vmem:[%s176 + $0x30] sm:$0xff]
      %v253 = vld [vmem:[%s176 + $0x38] sm:$0xff]
      %v254 = vld [vmem:[%s176 + $0x40] sm:$0xff]
      %v255 = vld [vmem:[%s176 + $0x48] sm:$0xff]
      %v256 = vld [vmem:[%s176 + $0x50] sm:$0xff]
      %v257 = vld [vmem:[%s176 + $0x58] sm:$0xff]
      %v258 = vld [vmem:[%s176 + $0x60] sm:$0xff]
      %v259 = vld [vmem:[%s176 + $0x68] sm:$0xff]
      %v260 = vld [vmem:[%s176 + $0x70] sm:$0xff]
      %v261 = vld [vmem:[%s176 + $0x78] sm:$0xff]
      %v262 = vld [vmem:[%s176 + $0x80] sm:$0xff]
      %v263 = vld [vmem:[%s176 + $0x88] sm:$0xff]
      %v264 = vld [vmem:[%s176 + $0x90] sm:$0xff]
      %v265 = vld [vmem:[%s176 + $0x98] sm:$0xff]
      %v266 = vld [vmem:[%s176 + $0xa0] sm:$0xff]
      %v267 = vld [vmem:[%s176 + $0xa8] sm:$0xff]
      %v268 = vld [vmem:[%s176 + $0xb0] sm:$0xff]
      %v269 = vld [vmem:[%s176 + $0xb8] sm:$0xff]
      %v270 = vld [vmem:[%s176 + $0xc0] sm:$0xff]
      %v271 = vld [vmem:[%s176 + $0xc8] sm:$0xff]
      %v272 = vld [vmem:[%s176 + $0xd0] sm:$0xff]
      %v273 = vld [vmem:[%s176 + $0xd8] sm:$0xff]
      %v274 = vld [vmem:[%s176 + $0xe0] sm:$0xff]
      %v275 = vld [vmem:[%s176 + $0xe8] sm:$0xff]
      %v276 = vld [vmem:[%s176 + $0xf0] sm:$0xff]
      %v277 = vld [vmem:[%s176 + $0xf8] sm:$0xff]
      %v278 = vld [vmem:[%s169] sm:$0xff]
      %v279 = vld [vmem:[%s169 + $0x8] sm:$0xff]
      %v280 = vld [vmem:[%s169 + $0x10] sm:$0xff]
      %v281 = vld [vmem:[%s169 + $0x18] sm:$0xff]
      %v282 = vld [vmem:[%s169 + $0x20] sm:$0xff]
      %v283 = vld [vmem:[%s169 + $0x28] sm:$0xff]
      %v284 = vld [vmem:[%s169 + $0x30] sm:$0xff]
      %v285 = vld [vmem:[%s169 + $0x38] sm:$0xff]
      %v286 = vld [vmem:[%s169 + $0x40] sm:$0xff]
      %v287 = vld [vmem:[%s169 + $0x48] sm:$0xff]
      %v288 = vld [vmem:[%s169 + $0x50] sm:$0xff]
      %v289 = vld [vmem:[%s169 + $0x58] sm:$0xff]
      %v290 = vld [vmem:[%s169 + $0x60] sm:$0xff]
      %v291 = vld [vmem:[%s169 + $0x68] sm:$0xff]
      %v292 = vld [vmem:[%s169 + $0x70] sm:$0xff]
      %v293 = vld [vmem:[%s169 + $0x78] sm:$0xff]
      %v294 = vld [vmem:[%s169 + $0x80] sm:$0xff]
      %v295 = vld [vmem:[%s169 + $0x88] sm:$0xff]
      %v296 = vld [vmem:[%s169 + $0x90] sm:$0xff]
      %v297 = vld [vmem:[%s169 + $0x98] sm:$0xff]
      %v298 = vld [vmem:[%s169 + $0xa0] sm:$0xff]
      %v299 = vld [vmem:[%s169 + $0xa8] sm:$0xff]
      %v300 = vld [vmem:[%s169 + $0xb0] sm:$0xff]
      %v301 = vld [vmem:[%s169 + $0xb8] sm:$0xff]
      %v302 = vld [vmem:[%s169 + $0xc0] sm:$0xff]
      %v303 = vld [vmem:[%s169 + $0xc8] sm:$0xff]
      %v304 = vld [vmem:[%s169 + $0xd0] sm:$0xff]
      %v305 = vld [vmem:[%s169 + $0xd8] sm:$0xff]
      %v306 = vld [vmem:[%s169 + $0xe0] sm:$0xff]
      %v307 = vld [vmem:[%s169 + $0xe8] sm:$0xff]
      %v308 = vld [vmem:[%s169 + $0xf0] sm:$0xff]
      %v309 = vld [vmem:[%s169 + $0xf8] sm:$0xff]
      %v342 = vunpack.c.l.b16 %v278
      %v343 = vunpack.c.h.b16 %v278
      %v344 = vunpack.c.l.b16 %v279
      %v345 = vunpack.c.h.b16 %v279
      %v346 = vunpack.c.l.b16 %v280
      %v347 = vunpack.c.h.b16 %v280
      %v348 = vunpack.c.l.b16 %v281
      %v349 = vunpack.c.h.b16 %v281
      %v350 = vunpack.c.l.b16 %v282
      %v351 = vunpack.c.h.b16 %v282
      %v352 = vunpack.c.l.b16 %v283
      %v353 = vunpack.c.h.b16 %v283
      %v354 = vunpack.c.l.b16 %v284
      %v355 = vunpack.c.h.b16 %v284
      %v356 = vunpack.c.l.b16 %v285
      %v357 = vunpack.c.h.b16 %v285
      %v358 = vunpack.c.l.b16 %v286
      %v359 = vunpack.c.h.b16 %v286
      %v360 = vunpack.c.l.b16 %v287
      %v361 = vunpack.c.h.b16 %v287
      %v362 = vunpack.c.l.b16 %v288
      %v363 = vunpack.c.h.b16 %v288
      %v364 = vunpack.c.l.b16 %v289
      %v365 = vunpack.c.h.b16 %v289
      %v366 = vunpack.c.l.b16 %v290
      %v367 = vunpack.c.h.b16 %v290
      %v368 = vunpack.c.l.b16 %v291
      %v369 = vunpack.c.h.b16 %v291
      %v370 = vunpack.c.l.b16 %v292
      %v371 = vunpack.c.h.b16 %v292
      %v372 = vunpack.c.l.b16 %v293
      %v373 = vunpack.c.h.b16 %v293
      %v374 = vunpack.c.l.b16 %v294
      %v375 = vunpack.c.h.b16 %v294
      %v376 = vunpack.c.l.b16 %v295
      %v377 = vunpack.c.h.b16 %v295
      %v378 = vunpack.c.l.b16 %v296
      %v379 = vunpack.c.h.b16 %v296
      %v380 = vunpack.c.l.b16 %v297
      %v381 = vunpack.c.h.b16 %v297
      %v382 = vunpack.c.l.b16 %v298
      %v383 = vunpack.c.h.b16 %v298
      %v384 = vunpack.c.l.b16 %v299
      %v385 = vunpack.c.h.b16 %v299
      %v386 = vunpack.c.l.b16 %v300
      %v387 = vunpack.c.h.b16 %v300
      %v388 = vunpack.c.l.b16 %v301
      %v389 = vunpack.c.h.b16 %v301
      %v390 = vunpack.c.l.b16 %v302
      %v391 = vunpack.c.h.b16 %v302
      %v392 = vunpack.c.l.b16 %v303
      %v393 = vunpack.c.h.b16 %v303
      %v394 = vunpack.c.l.b16 %v304
      %v395 = vunpack.c.h.b16 %v304
      %v396 = vunpack.c.l.b16 %v305
      %v397 = vunpack.c.h.b16 %v305
      %v398 = vunpack.c.l.b16 %v306
      %v399 = vunpack.c.h.b16 %v306
      %v400 = vunpack.c.l.b16 %v307
      %v401 = vunpack.c.h.b16 %v307
      %v402 = vunpack.c.l.b16 %v308
      %v403 = vunpack.c.h.b16 %v308
      %v404 = vunpack.c.l.b16 %v309
      %v405 = vunpack.c.h.b16 %v309
      %v406 = vpack.c.b16 %v344, %v342
      %v407 = vpack.c.b16 %v345, %v343
      %v408 = vpack.c.b16 %v348, %v346
      %v409 = vpack.c.b16 %v349, %v347
      %v410 = vpack.c.b16 %v352, %v350
      %v411 = vpack.c.b16 %v353, %v351
      %v412 = vpack.c.b16 %v356, %v354
      %v413 = vpack.c.b16 %v357, %v355
      %v414 = vpack.c.b16 %v360, %v358
      %v415 = vpack.c.b16 %v361, %v359
      %v416 = vpack.c.b16 %v364, %v362
      %v417 = vpack.c.b16 %v365, %v363
      %v418 = vpack.c.b16 %v368, %v366
      %v419 = vpack.c.b16 %v369, %v367
      %v420 = vpack.c.b16 %v372, %v370
      %v421 = vpack.c.b16 %v373, %v371
      %v422 = vpack.c.b16 %v376, %v374
      %v423 = vpack.c.b16 %v377, %v375
      %v424 = vpack.c.b16 %v380, %v378
      %v425 = vpack.c.b16 %v381, %v379
      %v426 = vpack.c.b16 %v384, %v382
      %v427 = vpack.c.b16 %v385, %v383
      %v428 = vpack.c.b16 %v388, %v386
      %v429 = vpack.c.b16 %v389, %v387
      %v430 = vpack.c.b16 %v392, %v390
      %v431 = vpack.c.b16 %v393, %v391
      %v432 = vpack.c.b16 %v396, %v394
      %v433 = vpack.c.b16 %v397, %v395
      %v434 = vpack.c.b16 %v400, %v398
      %v435 = vpack.c.b16 %v401, %v399
      %v436 = vpack.c.b16 %v404, %v402
      %v437 = vpack.c.b16 %v405, %v403
      %v502 = vunpack.c.l.b16 %v214
      %v503 = vunpack.c.l.b16 %v215
      %v504 = vunpack.c.l.b16 %v216
      %v505 = vunpack.c.l.b16 %v217
      %v506 = vunpack.c.l.b16 %v218
      %v507 = vunpack.c.l.b16 %v219
      %v508 = vunpack.c.l.b16 %v220
      %v509 = vunpack.c.l.b16 %v221
      %v510 = vunpack.c.l.b16 %v222
      %v511 = vunpack.c.l.b16 %v223
      %v512 = vunpack.c.l.b16 %v224
      %v513 = vunpack.c.l.b16 %v225
      %v514 = vunpack.c.l.b16 %v226
      %v515 = vunpack.c.l.b16 %v227
      %v516 = vunpack.c.l.b16 %v228
      %v517 = vunpack.c.l.b16 %v229
      %v518 = vunpack.c.l.b16 %v230
      %v519 = vunpack.c.l.b16 %v231
      %v520 = vunpack.c.l.b16 %v232
      %v521 = vunpack.c.l.b16 %v233
      %v522 = vunpack.c.l.b16 %v234
      %v523 = vunpack.c.l.b16 %v235
      %v524 = vunpack.c.l.b16 %v236
      %v525 = vunpack.c.l.b16 %v237
      %v526 = vunpack.c.l.b16 %v238
      %v527 = vunpack.c.l.b16 %v239
      %v528 = vunpack.c.l.b16 %v240
      %v529 = vunpack.c.l.b16 %v241
      %v530 = vunpack.c.l.b16 %v242
      %v531 = vunpack.c.l.b16 %v243
      %v532 = vunpack.c.l.b16 %v244
      %v533 = vunpack.c.l.b16 %v245
      %v534 = vpack.c.b16 %v503, %v502
      %v535 = vpack.c.b16 %v505, %v504
      %v536 = vpack.c.b16 %v507, %v506
      %v537 = vpack.c.b16 %v509, %v508
      %v538 = vpack.c.b16 %v511, %v510
      %v539 = vpack.c.b16 %v513, %v512
      %v540 = vpack.c.b16 %v515, %v514
      %v541 = vpack.c.b16 %v517, %v516
      %v542 = vpack.c.b16 %v519, %v518
      %v543 = vpack.c.b16 %v521, %v520
      %v544 = vpack.c.b16 %v523, %v522
      %v545 = vpack.c.b16 %v525, %v524
      %v546 = vpack.c.b16 %v527, %v526
      %v547 = vpack.c.b16 %v529, %v528
      %v548 = vpack.c.b16 %v531, %v530
      %v549 = vpack.c.b16 %v533, %v532
      %566 = vmatpush.bf16.msra.mxu0 %v541
      %567 = vmatpush.bf16.msra.mxu0 %v540
      %568 = vmatpush.bf16.msra.mxu0 %v539
      %569 = vmatpush.bf16.msra.mxu0 %v538
      %570 = vmatpush.bf16.msra.mxu0 %v537
      %571 = vmatpush.bf16.msra.mxu0 %v536
      %572 = vmatpush.bf16.msra.mxu0 %v535
      %573 = vmatpush.bf16.msra.mxu0 %v534
      %574 = vmatmul.bf16.gmra.mxu0 %v406
      %v575 = vpop.f32.mrf.mxu0
      %v576 = vadd.f32 0.0, %v575
      %v577 = vpop.f32.mrf.mxu0
      %v578 = vadd.f32 0.0, %v577
      %579 = vmatmul.bf16.gmra.mxu0 %v408
      %v580 = vpop.f32.mrf.mxu0
      %v581 = vadd.f32 0.0, %v580
      %v582 = vpop.f32.mrf.mxu0
      %v583 = vadd.f32 0.0, %v582
      %584 = vmatmul.bf16.gmra.mxu0 %v410
      %v585 = vpop.f32.mrf.mxu0
      %v586 = vadd.f32 0.0, %v585
      %v587 = vpop.f32.mrf.mxu0
      %v588 = vadd.f32 0.0, %v587
      %589 = vmatmul.bf16.gmra.mxu0 %v412
      %v590 = vpop.f32.mrf.mxu0
      %v591 = vadd.f32 0.0, %v590
      %v592 = vpop.f32.mrf.mxu0
      %v593 = vadd.f32 0.0, %v592
      %594 = vmatmul.bf16.gmra.mxu0 %v414
      %v595 = vpop.f32.mrf.mxu0
      %v596 = vadd.f32 0.0, %v595
      %v597 = vpop.f32.mrf.mxu0
      %v598 = vadd.f32 0.0, %v597
      %599 = vmatmul.bf16.gmra.mxu0 %v416
      %v600 = vpop.f32.mrf.mxu0
      %v601 = vadd.f32 0.0, %v600
      %v602 = vpop.f32.mrf.mxu0
      %v603 = vadd.f32 0.0, %v602
      %604 = vmatmul.bf16.gmra.mxu0 %v418
      %v605 = vpop.f32.mrf.mxu0
      %v606 = vadd.f32 0.0, %v605
      %v607 = vpop.f32.mrf.mxu0
      %v608 = vadd.f32 0.0, %v607
      %609 = vmatmul.bf16.gmra.mxu0 %v420
      %v610 = vpop.f32.mrf.mxu0
      %v611 = vadd.f32 0.0, %v610
      %v612 = vpop.f32.mrf.mxu0
      %v613 = vadd.f32 0.0, %v612
      %614 = vmatmul.bf16.gmra.mxu0 %v422
      %v615 = vpop.f32.mrf.mxu0
      %v616 = vadd.f32 0.0, %v615
      %v617 = vpop.f32.mrf.mxu0
      %v618 = vadd.f32 0.0, %v617
      %619 = vmatmul.bf16.gmra.mxu0 %v424
      %v620 = vpop.f32.mrf.mxu0
      %v621 = vadd.f32 0.0, %v620
      %v622 = vpop.f32.mrf.mxu0
      %v623 = vadd.f32 0.0, %v622
      %624 = vmatmul.bf16.gmra.mxu0 %v426
      %v625 = vpop.f32.mrf.mxu0
      %v626 = vadd.f32 0.0, %v625
      %v627 = vpop.f32.mrf.mxu0
      %v628 = vadd.f32 0.0, %v627
      %629 = vmatmul.bf16.gmra.mxu0 %v428
      %v630 = vpop.f32.mrf.mxu0
      %v631 = vadd.f32 0.0, %v630
      %v632 = vpop.f32.mrf.mxu0
      %v633 = vadd.f32 0.0, %v632
      %634 = vmatmul.bf16.gmra.mxu0 %v430
      %v635 = vpop.f32.mrf.mxu0
      %v636 = vadd.f32 0.0, %v635
      %v637 = vpop.f32.mrf.mxu0
      %v638 = vadd.f32 0.0, %v637
      %639 = vmatmul.bf16.gmra.mxu0 %v432
      %v640 = vpop.f32.mrf.mxu0
      %v641 = vadd.f32 0.0, %v640
      %v642 = vpop.f32.mrf.mxu0
      %v643 = vadd.f32 0.0, %v642
      %644 = vmatmul.bf16.gmra.mxu0 %v434
      %v645 = vpop.f32.mrf.mxu0
      %v646 = vadd.f32 0.0, %v645
      %v647 = vpop.f32.mrf.mxu0
      %v648 = vadd.f32 0.0, %v647
      %649 = vmatmul.bf16.gmra.mxu0 %v436
      %v650 = vpop.f32.mrf.mxu0
      %v651 = vadd.f32 0.0, %v650
      %v652 = vpop.f32.mrf.mxu0
      %v653 = vadd.f32 0.0, %v652
      %654 = vdwg.mxu0
      %655 = vmatpush.bf16.msra.mxu0 %v549
      %656 = vmatpush.bf16.msra.mxu0 %v548
      %657 = vmatpush.bf16.msra.mxu0 %v547
      %658 = vmatpush.bf16.msra.mxu0 %v546
      %659 = vmatpush.bf16.msra.mxu0 %v545
      %660 = vmatpush.bf16.msra.mxu0 %v544
      %661 = vmatpush.bf16.msra.mxu0 %v543
      %662 = vmatpush.bf16.msra.mxu0 %v542
      %663 = vmatmul.bf16.gmra.mxu0 %v407
      %v664 = vpop.f32.mrf.mxu0
      %v665 = vadd.f32 %v576, %v664
      %v666 = vpop.f32.mrf.mxu0
      %v667 = vadd.f32 %v578, %v666
      %668 = vmatmul.bf16.gmra.mxu0 %v409
      %v669 = vpop.f32.mrf.mxu0
      %v670 = vadd.f32 %v581, %v669
      %v671 = vpop.f32.mrf.mxu0
      %v672 = vadd.f32 %v583, %v671
      %673 = vmatmul.bf16.gmra.mxu0 %v411
      %v674 = vpop.f32.mrf.mxu0
      %v675 = vadd.f32 %v586, %v674
      %v676 = vpop.f32.mrf.mxu0
      %v677 = vadd.f32 %v588, %v676
      %678 = vmatmul.bf16.gmra.mxu0 %v413
      %v679 = vpop.f32.mrf.mxu0
      %v680 = vadd.f32 %v591, %v679
      %v681 = vpop.f32.mrf.mxu0
      %v682 = vadd.f32 %v593, %v681
      %683 = vmatmul.bf16.gmra.mxu0 %v415
      %v684 = vpop.f32.mrf.mxu0
      %v685 = vadd.f32 %v596, %v684
      %v686 = vpop.f32.mrf.mxu0
      %v687 = vadd.f32 %v598, %v686
      %688 = vmatmul.bf16.gmra.mxu0 %v417
      %v689 = vpop.f32.mrf.mxu0
      %v690 = vadd.f32 %v601, %v689
      %v691 = vpop.f32.mrf.mxu0
      %v692 = vadd.f32 %v603, %v691
      %693 = vmatmul.bf16.gmra.mxu0 %v419
      %v694 = vpop.f32.mrf.mxu0
      %v695 = vadd.f32 %v606, %v694
      %v696 = vpop.f32.mrf.mxu0
      %v697 = vadd.f32 %v608, %v696
      %698 = vmatmul.bf16.gmra.mxu0 %v421
      %v699 = vpop.f32.mrf.mxu0
      %v700 = vadd.f32 %v611, %v699
      %v701 = vpop.f32.mrf.mxu0
      %v702 = vadd.f32 %v613, %v701
      %703 = vmatmul.bf16.gmra.mxu0 %v423
      %v704 = vpop.f32.mrf.mxu0
      %v705 = vadd.f32 %v616, %v704
      %v706 = vpop.f32.mrf.mxu0
      %v707 = vadd.f32 %v618, %v706
      %708 = vmatmul.bf16.gmra.mxu0 %v425
      %v709 = vpop.f32.mrf.mxu0
      %v710 = vadd.f32 %v621, %v709
      %v711 = vpop.f32.mrf.mxu0
      %v712 = vadd.f32 %v623, %v711
      %713 = vmatmul.bf16.gmra.mxu0 %v427
      %v714 = vpop.f32.mrf.mxu0
      %v715 = vadd.f32 %v626, %v714
      %v716 = vpop.f32.mrf.mxu0
      %v717 = vadd.f32 %v628, %v716
      %718 = vmatmul.bf16.gmra.mxu0 %v429
      %v719 = vpop.f32.mrf.mxu0
      %v720 = vadd.f32 %v631, %v719
      %v721 = vpop.f32.mrf.mxu0
      %v722 = vadd.f32 %v633, %v721
      %723 = vmatmul.bf16.gmra.mxu0 %v431
      %v724 = vpop.f32.mrf.mxu0
      %v725 = vadd.f32 %v636, %v724
      %v726 = vpop.f32.mrf.mxu0
      %v727 = vadd.f32 %v638, %v726
      %728 = vmatmul.bf16.gmra.mxu0 %v433
      %v729 = vpop.f32.mrf.mxu0
      %v730 = vadd.f32 %v641, %v729
      %v731 = vpop.f32.mrf.mxu0
      %v732 = vadd.f32 %v643, %v731
      %733 = vmatmul.bf16.gmra.mxu0 %v435
      %v734 = vpop.f32.mrf.mxu0
      %v735 = vadd.f32 %v646, %v734
      %v736 = vpop.f32.mrf.mxu0
      %v737 = vadd.f32 %v648, %v736
      %738 = vmatmul.bf16.gmra.mxu0 %v437
      %v739 = vpop.f32.mrf.mxu0
      %v740 = vadd.f32 %v651, %v739
      %v741 = vpop.f32.mrf.mxu0
      %v742 = vadd.f32 %v653, %v741
      %743 = vdwg.mxu0
      %v744 = vadd.f32 %v246, %v665
      %v745 = vadd.f32 %v247, %v667
      %v746 = vadd.f32 %v248, %v670
      %v747 = vadd.f32 %v249, %v672
      %v748 = vadd.f32 %v250, %v675
      %v749 = vadd.f32 %v251, %v677
      %v750 = vadd.f32 %v252, %v680
      %v751 = vadd.f32 %v253, %v682
      %v752 = vadd.f32 %v254, %v685
      %v753 = vadd.f32 %v255, %v687
      %v754 = vadd.f32 %v256, %v690
      %v755 = vadd.f32 %v257, %v692
      %v756 = vadd.f32 %v258, %v695
      %v757 = vadd.f32 %v259, %v697
      %v758 = vadd.f32 %v260, %v700
      %v759 = vadd.f32 %v261, %v702
      %v760 = vadd.f32 %v262, %v705
      %v761 = vadd.f32 %v263, %v707
      %v762 = vadd.f32 %v264, %v710
      %v763 = vadd.f32 %v265, %v712
      %v764 = vadd.f32 %v266, %v715
      %v765 = vadd.f32 %v267, %v717
      %v766 = vadd.f32 %v268, %v720
      %v767 = vadd.f32 %v269, %v722
      %v768 = vadd.f32 %v270, %v725
      %v769 = vadd.f32 %v271, %v727
      %v770 = vadd.f32 %v272, %v730
      %v771 = vadd.f32 %v273, %v732
      %v772 = vadd.f32 %v274, %v735
      %v773 = vadd.f32 %v275, %v737
      %v774 = vadd.f32 %v276, %v740
      %v775 = vadd.f32 %v277, %v742
      %776 = vst [vmem:[%s176] sm:$0xff] %v744
      %777 = vst [vmem:[%s176 + $0x8] sm:$0xff] %v745
      %778 = vst [vmem:[%s176 + $0x10] sm:$0xff] %v746
      %779 = vst [vmem:[%s176 + $0x18] sm:$0xff] %v747
      %780 = vst [vmem:[%s176 + $0x20] sm:$0xff] %v748
      %781 = vst [vmem:[%s176 + $0x28] sm:$0xff] %v749
      %782 = vst [vmem:[%s176 + $0x30] sm:$0xff] %v750
      %783 = vst [vmem:[%s176 + $0x38] sm:$0xff] %v751
      %784 = vst [vmem:[%s176 + $0x40] sm:$0xff] %v752
      %785 = vst [vmem:[%s176 + $0x48] sm:$0xff] %v753
      %786 = vst [vmem:[%s176 + $0x50] sm:$0xff] %v754
      %787 = vst [vmem:[%s176 + $0x58] sm:$0xff] %v755
      %788 = vst [vmem:[%s176 + $0x60] sm:$0xff] %v756
      %789 = vst [vmem:[%s176 + $0x68] sm:$0xff] %v757
      %790 = vst [vmem:[%s176 + $0x70] sm:$0xff] %v758
      %791 = vst [vmem:[%s176 + $0x78] sm:$0xff] %v759
      %792 = vst [vmem:[%s176 + $0x80] sm:$0xff] %v760
      %793 = vst [vmem:[%s176 + $0x88] sm:$0xff] %v761
      %794 = vst [vmem:[%s176 + $0x90] sm:$0xff] %v762
      %795 = vst [vmem:[%s176 + $0x98] sm:$0xff] %v763
      %796 = vst [vmem:[%s176 + $0xa0] sm:$0xff] %v764
      %797 = vst [vmem:[%s176 + $0xa8] sm:$0xff] %v765
      %798 = vst [vmem:[%s176 + $0xb0] sm:$0xff] %v766
      %799 = vst [vmem:[%s176 + $0xb8] sm:$0xff] %v767
      %800 = vst [vmem:[%s176 + $0xc0] sm:$0xff] %v768
      %801 = vst [vmem:[%s176 + $0xc8] sm:$0xff] %v769
      %802 = vst [vmem:[%s176 + $0xd0] sm:$0xff] %v770
      %803 = vst [vmem:[%s176 + $0xd8] sm:$0xff] %v771
      %804 = vst [vmem:[%s176 + $0xe0] sm:$0xff] %v772
      %805 = vst [vmem:[%s176 + $0xe8] sm:$0xff] %v773
      %806 = vst [vmem:[%s176 + $0xf0] sm:$0xff] %v774
      %807 = vst [vmem:[%s176 + $0xf8] sm:$0xff] %v775
      %s808 = smul.u32 32, %s17
      %p809 = scmp.lt.s32.totalorder %s808, 63
      %s810 = scalar_select %p809, %s808, 63
      %s811 = smul.addr %s810, 8
      %s812 = scalar_lea.vmem %s2, %s811
      // Predicated region
      $region33: #{_forward.9} parent=27 // pred_check
        %p813 = pneg %p92
      $region34: #{_forward.9} parent=27 // pred_check_branch
        %815 = sbr.rel (%p813) target = $region36
      $region35: #{_forward.9} parent=27 // pred_region
        %s816 = smul.u32 32, %s17
      $region36: #{_forward.9} parent=27 // pred_fallthru
        _
    $region28: #{_forward.9} parent=5 // pred_fallthru
      _
    %p817 = scmp.le.s32.totalorder 2, %s8
    // Predicated region
    $region37: #{_forward.9} parent=5 // pred_check
      %p818 = pneg %p817
    $region38: #{_forward.9} parent=5 // pred_check_branch
      %820 = sbr.rel (%p818) target = $region40
    $region39: #{_forward.9} parent=5 // pred_region
      %s821 = ssub.s32 %s8, 2
      // Predicated region
      $region41: #{_forward.9} parent=39 // pred_check
        %p822 = pneg %p98
      $region42: #{_forward.9} parent=39 // pred_check_branch
        %824 = sbr.rel (%p822) target = $region44
      $region43: #{_forward.9} parent=39 // pred_region
        %s825 = smul.u32 32, %s19
        %p826 = scmp.lt.s32.totalorder %s825, 63
        %s827 = scalar_select %p826, %s825, 63
        %s828 = smul.addr %s827, 8
        %s829 = scalar_lea.vmem %s2, %s828
      $region44: #{_forward.9} parent=39 // pred_fallthru
        _
    $region40: #{_forward.9} parent=5 // pred_fallthru
      _
  $region6: #{_forward.9} parent=0 // loop_footer
    %s12 = sadd.s32 1, %s8
  $region7: #{_forward.9} parent=0 // loop_footer_branch
    %7 = sbr.rel target = $region3
  $region8: #{_forward.9} parent=0 // loop_exit
    _

</llo_original>
